<compile_context>
chip_gen: v7x
topology: tpu7x:2x2x1
jax: 0.10.0
libtpu: 0.0.40
codegen_flags: <defaults>
</compile_context>

<pallas_src>
import jax
import jax.numpy as jnp
from jax.experimental import pallas as pl
from jax.experimental.pallas import tpu as pltpu


# ----------------------------------------------------------------------------
# Fused Pallas kernel: encoder (2x SAGEConv per node type) + edge decoder
# ----------------------------------------------------------------------------
def _fused_forward_kernel(
    # node features
    x_mat_ref, x_con_ref,
    # packed edge indices: rows = [mc_src, mc_dst, cm_src, cm_dst], shape (4,E)
    edges_ref,
    # edge-label indices (decoder gather), each (n_label, 1)
    row_ref, col_ref,
    # layer-1 SAGE weights (already transposed: (in, hidden))
    c1_mc_wl_ref, c1_mc_wr_ref, c1_cm_wl_ref, c1_cm_wr_ref,
    # packed layer-1 biases: (2, hidden) = [c1_mc_b, c1_cm_b]
    b_hid_ref,
    # packed layer-2 weights: (4, hidden, out) = [c2_mc_wl, c2_mc_wr, c2_cm_wl, c2_cm_wr]
    w2_ref,
    # packed out-width biases: (3, out) = [c2_mc_b, c2_cm_b, dec_b1]
    b_out_ref,
    # decoder lin1 pre-split: (2, out, out) = [w1_top (z_row part), w1_bot (z_col part)]
    w1_dec_ref,
    # decoder lin2
    dec_w2_ref, dec_b2_ref,
    # outputs
    probs_ref, z_mat_ref, z_con_ref, k_ref,
):
    f32 = jnp.float32
    bf16 = jnp.bfloat16

    def dotf(a, b):
        return jnp.dot(a, b, preferred_element_type=f32)

    def count_adjacency(dst_ids, src_ids, n_dst, n_src):
        # dst_ids / src_ids: (1, E) int32, lane-major (E on the fast lane axis).
        # Returns raw-count adjacency A[i,j] = multiplicity of edge (src j -> dst i)
        # plus per-dst reciprocal in-degree (exact).
        e = dst_ids.shape[1]
        oh_dst = (jax.lax.broadcasted_iota(jnp.int32, (n_dst, e), 0)
                  == dst_ids).astype(bf16)                           # (n_dst, E)
        oh_src = (jax.lax.broadcasted_iota(jnp.int32, (n_src, e), 0)
                  == src_ids).astype(bf16)                           # (n_src, E)
        # contract over E (rhs transposed): bf16 operands, f32 accumulation
        cnt = jax.lax.dot_general(oh_dst, oh_src, (((1,), (1,)), ((), ())),
                                  preferred_element_type=f32)        # (n_dst, n_src)
        deg = jnp.sum(cnt, axis=-1, keepdims=True)
        inv_deg = 1.0 / jnp.maximum(deg, 1.0)                        # exact division
        return cnt, inv_deg

    def sage(cnt, inv_deg, x_src, x_dst, wl, wr, b, relu):
        # SAGEConv (bipartite, mean aggr): lin_l(mean_j x_src[j]) + lin_r(x_dst).
        # Normalisation commutes with both matmuls -> applied to the small
        # (n_dst, out) aggregate instead of the dense adjacency.
        if x_src.shape[1] > wl.shape[1]:
            agg = dotf(cnt, dotf(x_src, wl))       # project first (layer 2)
        else:
            agg = dotf(dotf(cnt, x_src), wl)       # aggregate first (layer 1)
        out = inv_deg * agg + dotf(x_dst, wr) + b
        return jnp.maximum(out, 0.0) if relu else out

    x_mat = x_mat_ref[...]
    x_con = x_con_ref[...]
    n_mat = x_mat.shape[0]
    n_con = x_con.shape[0]

    edges = edges_ref[...]                                           # (4, E) int32
    a_con_cnt, a_con_inv = count_adjacency(edges[1:2, :], edges[0:1, :],
                                           n_con, n_mat)
    a_mat_cnt, a_mat_inv = count_adjacency(edges[3:4, :], edges[2:3, :],
                                           n_mat, n_con)

    b_hid = b_hid_ref[...]
    b_out = b_out_ref[...]

    # ---- hetero GNN encoder ----
    h_con = sage(a_con_cnt, a_con_inv, x_mat, x_con,
                 c1_mc_wl_ref[...], c1_mc_wr_ref[...], b_hid[0:1, :], True)
    h_mat = sage(a_mat_cnt, a_mat_inv, x_con, x_mat,
                 c1_cm_wl_ref[...], c1_cm_wr_ref[...], b_hid[1:2, :], True)
    z_con = sage(a_con_cnt, a_con_inv, h_mat, h_con,
                 w2_ref[0], w2_ref[1], b_out[0:1, :], False)
    z_mat = sage(a_mat_cnt, a_mat_inv, h_con, h_mat,
                 w2_ref[2], w2_ref[3], b_out[1:2, :], False)

    z_mat_ref[...] = z_mat
    z_con_ref[...] = z_con

    # ---- edge decoder: in-kernel gather via one-hot selection matmuls ----
    # TODO(synk): replace with a direct gather at large n_label.
    n_label = row_ref.shape[0]
    sel_row = (row_ref[...] ==
               jax.lax.broadcasted_iota(jnp.int32, (n_label, n_mat), 1)).astype(f32)
    sel_col = (col_ref[...] ==
               jax.lax.broadcasted_iota(jnp.int32, (n_label, n_con), 1)).astype(f32)
    z_row = dotf(sel_row, z_mat)            # == z_mat[row]
    z_col = dotf(sel_col, z_con)            # == z_con[col]

    # k = concat([z_row, z_col], -1) is only materialized because it is an output.
    k_ref[...] = jnp.concatenate([z_row, z_col], axis=-1)

    # decoder MLP (dec_w1 pre-split, so the concat is off the compute path)
    h = jnp.maximum(dotf(z_row, w1_dec_ref[0]) + dotf(z_col, w1_dec_ref[1])
                    + b_out[2:3, :], 0.0)
    logits = dotf(h, dec_w2_ref[...]) + dec_b2_ref[...]
    m = jnp.max(logits, axis=-1, keepdims=True)
    e = jnp.exp(logits - m)
    probs_ref[...] = e / jnp.sum(e, axis=-1, keepdims=True)


_VMEM = pl.BlockSpec(memory_space=pltpu.MemorySpace.VMEM)


# ----------------------------------------------------------------------------
# Parameter setup & forward wrapper
# ----------------------------------------------------------------------------
def _linear_params(key, in_dim, out_dim, with_bias=True):
    kw, kb = jax.random.split(key)
    # stored already transposed: (in_dim, out_dim) so the kernel does x @ W
    w = jax.random.normal(kw, (in_dim, out_dim), jnp.float32) * 0.1
    b = (jax.random.normal(kb, (1, out_dim), jnp.float32) * 0.1
         if with_bias else jnp.zeros((1, out_dim), jnp.float32))
    return w, b


def init_params(key, f_mat, f_con, hidden, out_channels):
    ks = jax.random.split(key, 10)
    p = {}
    # layer 1, edge type materials -> concepts  (src=materials, dst=concepts)
    p["c1_mc_wl"], p["c1_mc_b"] = _linear_params(ks[0], f_mat, hidden)
    p["c1_mc_wr"], _ = _linear_params(ks[1], f_con, hidden, with_bias=False)
    # layer 1, reverse edge type concepts -> materials
    p["c1_cm_wl"], p["c1_cm_b"] = _linear_params(ks[2], f_con, hidden)
    p["c1_cm_wr"], _ = _linear_params(ks[3], f_mat, hidden, with_bias=False)
    # layer 2
    p["c2_mc_wl"], p["c2_mc_b"] = _linear_params(ks[4], hidden, out_channels)
    p["c2_mc_wr"], _ = _linear_params(ks[5], hidden, out_channels, with_bias=False)
    p["c2_cm_wl"], p["c2_cm_b"] = _linear_params(ks[6], hidden, out_channels)
    p["c2_cm_wr"], _ = _linear_params(ks[7], hidden, out_channels, with_bias=False)
    # decoder
    p["dec_w1"], p["dec_b1"] = _linear_params(ks[8], 2 * out_channels, out_channels)
    p["dec_w2"], p["dec_b2"] = _linear_params(ks[9], out_channels, 2)
    return p


def model_forward(params, x_dict, edge_index_dict, edge_label_index):
    x_mat = x_dict["materials"].astype(jnp.float32)
    x_con = x_dict["concepts"].astype(jnp.float32)
    n_mat, n_con = x_mat.shape[0], x_con.shape[0]
    out_ch = params["c2_mc_wl"].shape[1]

    ei_mc = edge_index_dict[("materials", "to", "concepts")].astype(jnp.int32)
    ei_cm = edge_index_dict[("concepts", "rev_to", "materials")].astype(jnp.int32)
    # Both relations packed into one lane-major (4, E) int32 buffer:
    #   [mc_src(materials), mc_dst(concepts), cm_src(concepts), cm_dst(materials)]
    # (ToUndirected guarantees both relations have the same edge count.)
    edges = jnp.concatenate([ei_mc, ei_cm], axis=0)

    row = edge_label_index[0].astype(jnp.int32).reshape(-1, 1)
    col = edge_label_index[1].astype(jnp.int32).reshape(-1, 1)
    n_label = row.shape[0]

    # Pack small per-layer params into fewer, denser transfers.
    b_hid = jnp.concatenate([params["c1_mc_b"], params["c1_cm_b"]], axis=0)     # (2, hidden)
    w2 = jnp.stack([params["c2_mc_wl"], params["c2_mc_wr"],
                    params["c2_cm_wl"], params["c2_cm_wr"]], axis=0)            # (4, hidden, out)
    b_out = jnp.concatenate([params["c2_mc_b"], params["c2_cm_b"],
                             params["dec_b1"]], axis=0)                         # (3, out)
    w1_dec = jnp.stack([params["dec_w1"][:out_ch], params["dec_w1"][out_ch:]],
                       axis=0)                                                  # (2, out, out)

    out_shapes = (
        jax.ShapeDtypeStruct((n_label, 2), jnp.float32),          # probabilities
        jax.ShapeDtypeStruct((n_mat, out_ch), jnp.float32),       # z_materials
        jax.ShapeDtypeStruct((n_con, out_ch), jnp.float32),       # z_concepts
        jax.ShapeDtypeStruct((n_label, 2 * out_ch), jnp.float32), # k
    )

    # TODO(synk): add a "parallel" grid axis over dst rows for v7x's 2nd TC and
    # an explicit vmem_limit_bytes when scaling beyond toy graph sizes.
    probs, z_mat, z_con, k = pl.pallas_call(
        _fused_forward_kernel,
        out_shape=out_shapes,
        in_specs=[_VMEM] * 15,
        out_specs=(_VMEM,) * 4,
    )(x_mat, x_con, edges, row, col,
      params["c1_mc_wl"], params["c1_mc_wr"],
      params["c1_cm_wl"], params["c1_cm_wr"],
      b_hid, w2, b_out, w1_dec,
      params["dec_w2"], params["dec_b2"])

    z_dict = {"materials": z_mat, "concepts": z_con}
    return probs, z_dict, k


# ----------------------------------------------------------------------------
# Driver
# ----------------------------------------------------------------------------
if __name__ == "__main__":
    key = jax.random.PRNGKey(0)
    k_x1, k_x2, k_e, k_lbl, k_p = jax.random.split(key, 5)

    N_MAT, N_CON = 16, 16
    F_MAT, F_CON = 8, 12
    HIDDEN, OUT = 32, 16
    N_EDGES, N_LABEL = 32, 8

    x_dict = {
        "materials": jax.random.normal(k_x1, (N_MAT, F_MAT), jnp.float32),
        "concepts": jax.random.normal(k_x2, (N_CON, F_CON), jnp.float32),
    }

    src = jax.random.randint(k_e, (N_EDGES,), 0, N_MAT)
    dst = jax.random.randint(jax.random.fold_in(k_e, 1), (N_EDGES,), 0, N_CON)
    ei_mc = jnp.stack([src, dst])               # materials -> concepts
    ei_cm = jnp.stack([dst, src])               # ToUndirected reverse edges
    edge_index_dict = {
        ("materials", "to", "concepts"): ei_mc,
        ("concepts", "rev_to", "materials"): ei_cm,
    }

    lbl_row = jax.random.randint(k_lbl, (N_LABEL,), 0, N_MAT)
    lbl_col = jax.random.randint(jax.random.fold_in(k_lbl, 1), (N_LABEL,), 0, N_CON)
    edge_label_index = jnp.stack([lbl_row, lbl_col])

    params = init_params(k_p, F_MAT, F_CON, HIDDEN, OUT)

    fwd = jax.jit(model_forward)
    probs, z_dict, k_feat = fwd(params, x_dict, edge_index_dict,
                                edge_label_index)
    jax.block_until_ready((probs, z_dict, k_feat))

    assert probs.shape == (N_LABEL, 2)
    assert z_dict["materials"].shape == (N_MAT, OUT)
    assert z_dict["concepts"].shape == (N_CON, OUT)
    assert k_feat.shape == (N_LABEL, 2 * OUT)
    assert bool(jnp.all(jnp.isfinite(probs)))
    # exact-division softmax: rows sum to 1 to fp32 accuracy
    assert jnp.allclose(jnp.sum(probs, axis=-1), 1.0, atol=1e-5)

    print("KERNEL_OK")
</pallas_src>

<mosaic_0001>
module attributes {stable_mosaic.version = 11 : i64} {
  func.func @_fused_forward_kernel(%arg0: memref<16x8xf32, #tpu.memory_space<vmem>>, %arg1: memref<16x12xf32, #tpu.memory_space<vmem>>, %arg2: memref<4x32xi32, #tpu.memory_space<vmem>>, %arg3: memref<8x1xi32, #tpu.memory_space<vmem>>, %arg4: memref<8x1xi32, #tpu.memory_space<vmem>>, %arg5: memref<8x32xf32, #tpu.memory_space<vmem>>, %arg6: memref<12x32xf32, #tpu.memory_space<vmem>>, %arg7: memref<12x32xf32, #tpu.memory_space<vmem>>, %arg8: memref<8x32xf32, #tpu.memory_space<vmem>>, %arg9: memref<2x32xf32, #tpu.memory_space<vmem>>, %arg10: memref<4x32x16xf32, #tpu.memory_space<vmem>>, %arg11: memref<3x16xf32, #tpu.memory_space<vmem>>, %arg12: memref<2x16x16xf32, #tpu.memory_space<vmem>>, %arg13: memref<16x2xf32, #tpu.memory_space<vmem>>, %arg14: memref<1x2xf32, #tpu.memory_space<vmem>>, %arg15: memref<8x2xf32, #tpu.memory_space<vmem>>, %arg16: memref<16x16xf32, #tpu.memory_space<vmem>>, %arg17: memref<16x16xf32, #tpu.memory_space<vmem>>, %arg18: memref<8x32xf32, #tpu.memory_space<vmem>>) attributes {dimension_semantics = [], scalar_prefetch = 0 : i64, scratch_operands = 0 : i64, tpu.core_type = #tpu.core_type<tc>} {
    %c0 = arith.constant 0 : index
    %c0_0 = arith.constant 0 : index
    %0 = vector.load %arg0[%c0, %c0_0] : memref<16x8xf32, #tpu.memory_space<vmem>>, vector<16x8xf32>
    %c0_1 = arith.constant 0 : index
    %c0_2 = arith.constant 0 : index
    %1 = vector.load %arg1[%c0_1, %c0_2] : memref<16x12xf32, #tpu.memory_space<vmem>>, vector<16x12xf32>
    %c0_3 = arith.constant 0 : index
    %c0_4 = arith.constant 0 : index
    %2 = vector.load %arg2[%c0_3, %c0_4] : memref<4x32xi32, #tpu.memory_space<vmem>>, vector<4x32xi32>
    %3 = vector.extract_strided_slice %2 {offsets = [1, 0], sizes = [1, 32], strides = [1, 1]} : vector<4x32xi32> to vector<1x32xi32>
    %4 = vector.extract_strided_slice %2 {offsets = [0, 0], sizes = [1, 32], strides = [1, 1]} : vector<4x32xi32> to vector<1x32xi32>
    %5 = tpu.iota {dimensions = array<i32: 0>} : vector<16x32xi32>
    %6 = vector.broadcast %3 : vector<1x32xi32> to vector<16x32xi32>
    %7 = arith.cmpi eq, %5, %6 : vector<16x32xi32>
    %8 = arith.extui %7 : vector<16x32xi1> to vector<16x32xi32>
    %9 = arith.sitofp %8 : vector<16x32xi32> to vector<16x32xf32>
    %10 = arith.truncf %9 : vector<16x32xf32> to vector<16x32xbf16>
    %11 = tpu.iota {dimensions = array<i32: 0>} : vector<16x32xi32>
    %12 = vector.broadcast %4 : vector<1x32xi32> to vector<16x32xi32>
    %13 = arith.cmpi eq, %11, %12 : vector<16x32xi32>
    %14 = arith.extui %13 : vector<16x32xi1> to vector<16x32xi32>
    %15 = arith.sitofp %14 : vector<16x32xi32> to vector<16x32xf32>
    %16 = arith.truncf %15 : vector<16x32xf32> to vector<16x32xbf16>
    %cst = arith.constant dense<0.000000e+00> : vector<16x16xf32>
    %17 = tpu.matmul %10, %16, %cst {dimension_numbers = #tpu.dot_dimension_numbers<[1], [1], [0], [0], [0, 0, 1, 0], [], []>} : vector<16x32xbf16>, vector<16x32xbf16>, vector<16x16xf32> -> vector<16x16xf32>
    %cst_5 = arith.constant dense<0.000000e+00> : vector<16xf32>
    %18 = vector.multi_reduction <add>, %17, %cst_5 [1] : vector<16x16xf32> to vector<16xf32>
    %19 = vector.shape_cast %18 : vector<16xf32> to vector<16x1xf32>
    %cst_6 = arith.constant 1.000000e+00 : f32
    %20 = vector.broadcast %cst_6 : f32 to vector<16x1xf32>
    %21 = arith.maximumf %19, %20 : vector<16x1xf32>
    %cst_7 = arith.constant 1.000000e+00 : f32
    %22 = vector.broadcast %cst_7 : f32 to vector<16x1xf32>
    %23 = arith.divf %22, %21 : vector<16x1xf32>
    %24 = vector.extract_strided_slice %2 {offsets = [3, 0], sizes = [1, 32], strides = [1, 1]} : vector<4x32xi32> to vector<1x32xi32>
    %25 = vector.extract_strided_slice %2 {offsets = [2, 0], sizes = [1, 32], strides = [1, 1]} : vector<4x32xi32> to vector<1x32xi32>
    %26 = tpu.iota {dimensions = array<i32: 0>} : vector<16x32xi32>
    %27 = vector.broadcast %24 : vector<1x32xi32> to vector<16x32xi32>
    %28 = arith.cmpi eq, %26, %27 : vector<16x32xi32>
    %29 = arith.extui %28 : vector<16x32xi1> to vector<16x32xi32>
    %30 = arith.sitofp %29 : vector<16x32xi32> to vector<16x32xf32>
    %31 = arith.truncf %30 : vector<16x32xf32> to vector<16x32xbf16>
    %32 = tpu.iota {dimensions = array<i32: 0>} : vector<16x32xi32>
    %33 = vector.broadcast %25 : vector<1x32xi32> to vector<16x32xi32>
    %34 = arith.cmpi eq, %32, %33 : vector<16x32xi32>
    %35 = arith.extui %34 : vector<16x32xi1> to vector<16x32xi32>
    %36 = arith.sitofp %35 : vector<16x32xi32> to vector<16x32xf32>
    %37 = arith.truncf %36 : vector<16x32xf32> to vector<16x32xbf16>
    %cst_8 = arith.constant dense<0.000000e+00> : vector<16x16xf32>
    %38 = tpu.matmul %31, %37, %cst_8 {dimension_numbers = #tpu.dot_dimension_numbers<[1], [1], [0], [0], [0, 0, 1, 0], [], []>} : vector<16x32xbf16>, vector<16x32xbf16>, vector<16x16xf32> -> vector<16x16xf32>
    %cst_9 = arith.constant dense<0.000000e+00> : vector<16xf32>
    %39 = vector.multi_reduction <add>, %38, %cst_9 [1] : vector<16x16xf32> to vector<16xf32>
    %40 = vector.shape_cast %39 : vector<16xf32> to vector<16x1xf32>
    %cst_10 = arith.constant 1.000000e+00 : f32
    %41 = vector.broadcast %cst_10 : f32 to vector<16x1xf32>
    %42 = arith.maximumf %40, %41 : vector<16x1xf32>
    %cst_11 = arith.constant 1.000000e+00 : f32
    %43 = vector.broadcast %cst_11 : f32 to vector<16x1xf32>
    %44 = arith.divf %43, %42 : vector<16x1xf32>
    %c0_12 = arith.constant 0 : index
    %c0_13 = arith.constant 0 : index
    %45 = vector.load %arg9[%c0_12, %c0_13] : memref<2x32xf32, #tpu.memory_space<vmem>>, vector<2x32xf32>
    %c0_14 = arith.constant 0 : index
    %c0_15 = arith.constant 0 : index
    %46 = vector.load %arg11[%c0_14, %c0_15] : memref<3x16xf32, #tpu.memory_space<vmem>>, vector<3x16xf32>
    %c0_16 = arith.constant 0 : index
    %c0_17 = arith.constant 0 : index
    %47 = vector.load %arg5[%c0_16, %c0_17] : memref<8x32xf32, #tpu.memory_space<vmem>>, vector<8x32xf32>
    %c0_18 = arith.constant 0 : index
    %c0_19 = arith.constant 0 : index
    %48 = vector.load %arg6[%c0_18, %c0_19] : memref<12x32xf32, #tpu.memory_space<vmem>>, vector<12x32xf32>
    %49 = vector.extract_strided_slice %45 {offsets = [0, 0], sizes = [1, 32], strides = [1, 1]} : vector<2x32xf32> to vector<1x32xf32>
    %cst_20 = arith.constant dense<0.000000e+00> : vector<16x8xf32>
    %50 = tpu.matmul %17, %0, %cst_20 {dimension_numbers = #tpu.dot_dimension_numbers<[1], [0], [0], [1], [0, 0, 1, 1], [], []>} : vector<16x16xf32>, vector<16x8xf32>, vector<16x8xf32> -> vector<16x8xf32>
    %cst_21 = arith.constant dense<0.000000e+00> : vector<16x32xf32>
    %51 = tpu.matmul %50, %47, %cst_21 {dimension_numbers = #tpu.dot_dimension_numbers<[1], [0], [0], [1], [0, 0, 1, 1], [], []>} : vector<16x8xf32>, vector<8x32xf32>, vector<16x32xf32> -> vector<16x32xf32>
    %52 = vector.broadcast %23 : vector<16x1xf32> to vector<16x32xf32>
    %53 = arith.mulf %52, %51 : vector<16x32xf32>
    %cst_22 = arith.constant dense<0.000000e+00> : vector<16x32xf32>
    %54 = tpu.matmul %1, %48, %cst_22 {dimension_numbers = #tpu.dot_dimension_numbers<[1], [0], [0], [1], [0, 0, 1, 1], [], []>} : vector<16x12xf32>, vector<12x32xf32>, vector<16x32xf32> -> vector<16x32xf32>
    %55 = arith.addf %53, %54 : vector<16x32xf32>
    %56 = vector.broadcast %49 : vector<1x32xf32> to vector<16x32xf32>
    %57 = arith.addf %55, %56 : vector<16x32xf32>
    %cst_23 = arith.constant 0.000000e+00 : f32
    %58 = vector.broadcast %cst_23 : f32 to vector<16x32xf32>
    %59 = arith.maximumf %57, %58 : vector<16x32xf32>
    %c0_24 = arith.constant 0 : index
    %c0_25 = arith.constant 0 : index
    %60 = vector.load %arg7[%c0_24, %c0_25] : memref<12x32xf32, #tpu.memory_space<vmem>>, vector<12x32xf32>
    %c0_26 = arith.constant 0 : index
    %c0_27 = arith.constant 0 : index
    %61 = vector.load %arg8[%c0_26, %c0_27] : memref<8x32xf32, #tpu.memory_space<vmem>>, vector<8x32xf32>
    %62 = vector.extract_strided_slice %45 {offsets = [1, 0], sizes = [1, 32], strides = [1, 1]} : vector<2x32xf32> to vector<1x32xf32>
    %cst_28 = arith.constant dense<0.000000e+00> : vector<16x12xf32>
    %63 = tpu.matmul %38, %1, %cst_28 {dimension_numbers = #tpu.dot_dimension_numbers<[1], [0], [0], [1], [0, 0, 1, 1], [], []>} : vector<16x16xf32>, vector<16x12xf32>, vector<16x12xf32> -> vector<16x12xf32>
    %cst_29 = arith.constant dense<0.000000e+00> : vector<16x32xf32>
    %64 = tpu.matmul %63, %60, %cst_29 {dimension_numbers = #tpu.dot_dimension_numbers<[1], [0], [0], [1], [0, 0, 1, 1], [], []>} : vector<16x12xf32>, vector<12x32xf32>, vector<16x32xf32> -> vector<16x32xf32>
    %65 = vector.broadcast %44 : vector<16x1xf32> to vector<16x32xf32>
    %66 = arith.mulf %65, %64 : vector<16x32xf32>
    %cst_30 = arith.constant dense<0.000000e+00> : vector<16x32xf32>
    %67 = tpu.matmul %0, %61, %cst_30 {dimension_numbers = #tpu.dot_dimension_numbers<[1], [0], [0], [1], [0, 0, 1, 1], [], []>} : vector<16x8xf32>, vector<8x32xf32>, vector<16x32xf32> -> vector<16x32xf32>
    %68 = arith.addf %66, %67 : vector<16x32xf32>
    %69 = vector.broadcast %62 : vector<1x32xf32> to vector<16x32xf32>
    %70 = arith.addf %68, %69 : vector<16x32xf32>
    %cst_31 = arith.constant 0.000000e+00 : f32
    %71 = vector.broadcast %cst_31 : f32 to vector<16x32xf32>
    %72 = arith.maximumf %70, %71 : vector<16x32xf32>
    %c0_32 = arith.constant 0 : index
    %c0_33 = arith.constant 0 : index
    %c0_34 = arith.constant 0 : index
    %73 = vector.load %arg10[%c0_32, %c0_33, %c0_34] : memref<4x32x16xf32, #tpu.memory_space<vmem>>, vector<1x32x16xf32>
    %74 = vector.shape_cast %73 : vector<1x32x16xf32> to vector<32x16xf32>
    %c1 = arith.constant 1 : index
    %c0_35 = arith.constant 0 : index
    %c0_36 = arith.constant 0 : index
    %75 = vector.load %arg10[%c1, %c0_35, %c0_36] : memref<4x32x16xf32, #tpu.memory_space<vmem>>, vector<1x32x16xf32>
    %76 = vector.shape_cast %75 : vector<1x32x16xf32> to vector<32x16xf32>
    %77 = vector.extract_strided_slice %46 {offsets = [0, 0], sizes = [1, 16], strides = [1, 1]} : vector<3x16xf32> to vector<1x16xf32>
    %cst_37 = arith.constant dense<0.000000e+00> : vector<16x16xf32>
    %78 = tpu.matmul %72, %74, %cst_37 {dimension_numbers = #tpu.dot_dimension_numbers<[1], [0], [0], [1], [0, 0, 1, 1], [], []>} : vector<16x32xf32>, vector<32x16xf32>, vector<16x16xf32> -> vector<16x16xf32>
    %cst_38 = arith.constant dense<0.000000e+00> : vector<16x16xf32>
    %79 = tpu.matmul %17, %78, %cst_38 {dimension_numbers = #tpu.dot_dimension_numbers<[1], [0], [0], [1], [0, 0, 1, 1], [], []>} : vector<16x16xf32>, vector<16x16xf32>, vector<16x16xf32> -> vector<16x16xf32>
    %80 = vector.broadcast %23 : vector<16x1xf32> to vector<16x16xf32>
    %81 = arith.mulf %80, %79 : vector<16x16xf32>
    %cst_39 = arith.constant dense<0.000000e+00> : vector<16x16xf32>
    %82 = tpu.matmul %59, %76, %cst_39 {dimension_numbers = #tpu.dot_dimension_numbers<[1], [0], [0], [1], [0, 0, 1, 1], [], []>} : vector<16x32xf32>, vector<32x16xf32>, vector<16x16xf32> -> vector<16x16xf32>
    %83 = arith.addf %81, %82 : vector<16x16xf32>
    %84 = vector.broadcast %77 : vector<1x16xf32> to vector<16x16xf32>
    %85 = arith.addf %83, %84 : vector<16x16xf32>
    %c2 = arith.constant 2 : index
    %c0_40 = arith.constant 0 : index
    %c0_41 = arith.constant 0 : index
    %86 = vector.load %arg10[%c2, %c0_40, %c0_41] : memref<4x32x16xf32, #tpu.memory_space<vmem>>, vector<1x32x16xf32>
    %87 = vector.shape_cast %86 : vector<1x32x16xf32> to vector<32x16xf32>
    %c3 = arith.constant 3 : index
    %c0_42 = arith.constant 0 : index
    %c0_43 = arith.constant 0 : index
    %88 = vector.load %arg10[%c3, %c0_42, %c0_43] : memref<4x32x16xf32, #tpu.memory_space<vmem>>, vector<1x32x16xf32>
    %89 = vector.shape_cast %88 : vector<1x32x16xf32> to vector<32x16xf32>
    %90 = vector.extract_strided_slice %46 {offsets = [1, 0], sizes = [1, 16], strides = [1, 1]} : vector<3x16xf32> to vector<1x16xf32>
    %cst_44 = arith.constant dense<0.000000e+00> : vector<16x16xf32>
    %91 = tpu.matmul %59, %87, %cst_44 {dimension_numbers = #tpu.dot_dimension_numbers<[1], [0], [0], [1], [0, 0, 1, 1], [], []>} : vector<16x32xf32>, vector<32x16xf32>, vector<16x16xf32> -> vector<16x16xf32>
    %cst_45 = arith.constant dense<0.000000e+00> : vector<16x16xf32>
    %92 = tpu.matmul %38, %91, %cst_45 {dimension_numbers = #tpu.dot_dimension_numbers<[1], [0], [0], [1], [0, 0, 1, 1], [], []>} : vector<16x16xf32>, vector<16x16xf32>, vector<16x16xf32> -> vector<16x16xf32>
    %93 = vector.broadcast %44 : vector<16x1xf32> to vector<16x16xf32>
    %94 = arith.mulf %93, %92 : vector<16x16xf32>
    %cst_46 = arith.constant dense<0.000000e+00> : vector<16x16xf32>
    %95 = tpu.matmul %72, %89, %cst_46 {dimension_numbers = #tpu.dot_dimension_numbers<[1], [0], [0], [1], [0, 0, 1, 1], [], []>} : vector<16x32xf32>, vector<32x16xf32>, vector<16x16xf32> -> vector<16x16xf32>
    %96 = arith.addf %94, %95 : vector<16x16xf32>
    %97 = vector.broadcast %90 : vector<1x16xf32> to vector<16x16xf32>
    %98 = arith.addf %96, %97 : vector<16x16xf32>
    %c0_47 = arith.constant 0 : index
    %c0_48 = arith.constant 0 : index
    %99 = vector.load %arg16[%c0_47, %c0_48] : memref<16x16xf32, #tpu.memory_space<vmem>>, vector<16x16xf32>
    tpu.vector_store %arg16[%c0_47, %c0_48], %98 {strides = array<i32>} : memref<16x16xf32, #tpu.memory_space<vmem>>, vector<16x16xf32>,
    %c0_49 = arith.constant 0 : index
    %c0_50 = arith.constant 0 : index
    %100 = vector.load %arg17[%c0_49, %c0_50] : memref<16x16xf32, #tpu.memory_space<vmem>>, vector<16x16xf32>
    tpu.vector_store %arg17[%c0_49, %c0_50], %85 {strides = array<i32>} : memref<16x16xf32, #tpu.memory_space<vmem>>, vector<16x16xf32>,
    %c0_51 = arith.constant 0 : index
    %c0_52 = arith.constant 0 : index
    %101 = vector.load %arg3[%c0_51, %c0_52] : memref<8x1xi32, #tpu.memory_space<vmem>>, vector<8x1xi32>
    %102 = tpu.iota {dimensions = array<i32: 1>} : vector<8x16xi32>
    %103 = vector.broadcast %101 : vector<8x1xi32> to vector<8x16xi32>
    %104 = arith.cmpi eq, %103, %102 : vector<8x16xi32>
    %105 = arith.extui %104 : vector<8x16xi1> to vector<8x16xi32>
    %106 = arith.sitofp %105 : vector<8x16xi32> to vector<8x16xf32>
    %c0_53 = arith.constant 0 : index
    %c0_54 = arith.constant 0 : index
    %107 = vector.load %arg4[%c0_53, %c0_54] : memref<8x1xi32, #tpu.memory_space<vmem>>, vector<8x1xi32>
    %108 = tpu.iota {dimensions = array<i32: 1>} : vector<8x16xi32>
    %109 = vector.broadcast %107 : vector<8x1xi32> to vector<8x16xi32>
    %110 = arith.cmpi eq, %109, %108 : vector<8x16xi32>
    %111 = arith.extui %110 : vector<8x16xi1> to vector<8x16xi32>
    %112 = arith.sitofp %111 : vector<8x16xi32> to vector<8x16xf32>
    %cst_55 = arith.constant dense<0.000000e+00> : vector<8x16xf32>
    %113 = tpu.matmul %106, %98, %cst_55 {dimension_numbers = #tpu.dot_dimension_numbers<[1], [0], [0], [1], [0, 0, 1, 1], [], []>} : vector<8x16xf32>, vector<16x16xf32>, vector<8x16xf32> -> vector<8x16xf32>
    %cst_56 = arith.constant dense<0.000000e+00> : vector<8x16xf32>
    %114 = tpu.matmul %112, %85, %cst_56 {dimension_numbers = #tpu.dot_dimension_numbers<[1], [0], [0], [1], [0, 0, 1, 1], [], []>} : vector<8x16xf32>, vector<16x16xf32>, vector<8x16xf32> -> vector<8x16xf32>
    %115 = tpu.concatenate %113, %114 in 1 : vector<8x16xf32>, vector<8x16xf32> -> vector<8x32xf32>
    %c0_57 = arith.constant 0 : index
    %c0_58 = arith.constant 0 : index
    %116 = vector.load %arg18[%c0_57, %c0_58] : memref<8x32xf32, #tpu.memory_space<vmem>>, vector<8x32xf32>
    tpu.vector_store %arg18[%c0_57, %c0_58], %115 {strides = array<i32>} : memref<8x32xf32, #tpu.memory_space<vmem>>, vector<8x32xf32>,
    %c0_59 = arith.constant 0 : index
    %c0_60 = arith.constant 0 : index
    %c0_61 = arith.constant 0 : index
    %117 = vector.load %arg12[%c0_59, %c0_60, %c0_61] : memref<2x16x16xf32, #tpu.memory_space<vmem>>, vector<1x16x16xf32>
    %118 = vector.shape_cast %117 : vector<1x16x16xf32> to vector<16x16xf32>
    %cst_62 = arith.constant dense<0.000000e+00> : vector<8x16xf32>
    %119 = tpu.matmul %113, %118, %cst_62 {dimension_numbers = #tpu.dot_dimension_numbers<[1], [0], [0], [1], [0, 0, 1, 1], [], []>} : vector<8x16xf32>, vector<16x16xf32>, vector<8x16xf32> -> vector<8x16xf32>
    %c1_63 = arith.constant 1 : index
    %c0_64 = arith.constant 0 : index
    %c0_65 = arith.constant 0 : index
    %120 = vector.load %arg12[%c1_63, %c0_64, %c0_65] : memref<2x16x16xf32, #tpu.memory_space<vmem>>, vector<1x16x16xf32>
    %121 = vector.shape_cast %120 : vector<1x16x16xf32> to vector<16x16xf32>
    %cst_66 = arith.constant dense<0.000000e+00> : vector<8x16xf32>
    %122 = tpu.matmul %114, %121, %cst_66 {dimension_numbers = #tpu.dot_dimension_numbers<[1], [0], [0], [1], [0, 0, 1, 1], [], []>} : vector<8x16xf32>, vector<16x16xf32>, vector<8x16xf32> -> vector<8x16xf32>
    %123 = arith.addf %119, %122 : vector<8x16xf32>
    %124 = vector.extract_strided_slice %46 {offsets = [2, 0], sizes = [1, 16], strides = [1, 1]} : vector<3x16xf32> to vector<1x16xf32>
    %125 = vector.broadcast %124 : vector<1x16xf32> to vector<8x16xf32>
    %126 = arith.addf %123, %125 : vector<8x16xf32>
    %cst_67 = arith.constant 0.000000e+00 : f32
    %127 = vector.broadcast %cst_67 : f32 to vector<8x16xf32>
    %128 = arith.maximumf %126, %127 : vector<8x16xf32>
    %c0_68 = arith.constant 0 : index
    %c0_69 = arith.constant 0 : index
    %129 = vector.load %arg13[%c0_68, %c0_69] : memref<16x2xf32, #tpu.memory_space<vmem>>, vector<16x2xf32>
    %cst_70 = arith.constant dense<0.000000e+00> : vector<8x2xf32>
    %130 = tpu.matmul %128, %129, %cst_70 {dimension_numbers = #tpu.dot_dimension_numbers<[1], [0], [0], [1], [0, 0, 1, 1], [], []>} : vector<8x16xf32>, vector<16x2xf32>, vector<8x2xf32> -> vector<8x2xf32>
    %c0_71 = arith.constant 0 : index
    %c0_72 = arith.constant 0 : index
    %131 = vector.load %arg14[%c0_71, %c0_72] : memref<1x2xf32, #tpu.memory_space<vmem>>, vector<1x2xf32>
    %132 = vector.broadcast %131 : vector<1x2xf32> to vector<8x2xf32>
    %133 = arith.addf %130, %132 : vector<8x2xf32>
    %cst_73 = arith.constant dense<0xFF800000> : vector<8xf32>
    %134 = vector.multi_reduction <maximumf>, %133, %cst_73 [1] : vector<8x2xf32> to vector<8xf32>
    %135 = vector.shape_cast %134 : vector<8xf32> to vector<8x1xf32>
    %136 = vector.broadcast %135 : vector<8x1xf32> to vector<8x2xf32>
    %137 = arith.subf %133, %136 : vector<8x2xf32>
    %138 = math.exp %137 : vector<8x2xf32>
    %cst_74 = arith.constant dense<0.000000e+00> : vector<8xf32>
    %139 = vector.multi_reduction <add>, %138, %cst_74 [1] : vector<8x2xf32> to vector<8xf32>
    %140 = vector.shape_cast %139 : vector<8xf32> to vector<8x1xf32>
    %141 = vector.broadcast %140 : vector<8x1xf32> to vector<8x2xf32>
    %142 = arith.divf %138, %141 : vector<8x2xf32>
    %c0_75 = arith.constant 0 : index
    %c0_76 = arith.constant 0 : index
    %143 = vector.load %arg15[%c0_75, %c0_76] : memref<8x2xf32, #tpu.memory_space<vmem>>, vector<8x2xf32>
    tpu.vector_store %arg15[%c0_75, %c0_76], %142 {strides = array<i32>} : memref<8x2xf32, #tpu.memory_space<vmem>>, vector<8x2xf32>,
    return
  }
}

</mosaic_0001>

<llo_original>
// kernel: model_forward.1
$region0: #{model_forward.1}
  #allocation0 [shape = 'u32[]', space=smem, size = 0x4, offset = 0x4, fixed_abs, tag = 'smem constant byte address 0x4 - core index']
  #allocation1 [shape = 'u32[144,128]{1,0:T(1,128)}', space=vmem, size = 0x12000, scoped, tag = 'internal scratch']
  %s0 = inlined_call_operand.vmem [shape: f32[16,8], index: 0, kind: input, shape index: {}]
  %s1 = inlined_call_operand.vmem [shape: f32[16,12], index: 1, kind: input, shape index: {}]
  %s2 = inlined_call_operand.vmem [shape: s32[4,32], index: 2, kind: input, shape index: {}]
  %s3 = inlined_call_operand.vmem [shape: s32[8,1], index: 3, kind: input, shape index: {}]
  %s4 = inlined_call_operand.vmem [shape: s32[8,1], index: 4, kind: input, shape index: {}]
  %s5 = inlined_call_operand.vmem [shape: f32[8,32], index: 5, kind: input, shape index: {}]
  %s6 = inlined_call_operand.vmem [shape: f32[12,32], index: 6, kind: input, shape index: {}]
  %s7 = inlined_call_operand.vmem [shape: f32[12,32], index: 7, kind: input, shape index: {}]
  %s8 = inlined_call_operand.vmem [shape: f32[8,32], index: 8, kind: input, shape index: {}]
  %s9 = inlined_call_operand.vmem [shape: f32[2,32], index: 9, kind: input, shape index: {}]
  %s10 = inlined_call_operand.vmem [shape: f32[4,32,16], index: 10, kind: input, shape index: {}]
  %s11 = inlined_call_operand.vmem [shape: f32[3,16], index: 11, kind: input, shape index: {}]
  %s12 = inlined_call_operand.vmem [shape: f32[2,16,16], index: 12, kind: input, shape index: {}]
  %s13 = inlined_call_operand.vmem [shape: f32[16,2], index: 13, kind: input, shape index: {}]
  %s14 = inlined_call_operand.vmem [shape: f32[1,2], index: 14, kind: input, shape index: {}]
  %s15 = inlined_call_operand.vmem [shape: f32[8,2], index: 15, kind: output, shape index: {0}]
  %s16 = inlined_call_operand.hbm [shape: f32[16,16], index: 16, kind: output, shape index: {1}]
  %s17 = inlined_call_operand.hbm [shape: f32[16,16], index: 17, kind: output, shape index: {2}]
  %s18 = inlined_call_operand.hbm [shape: f32[8,32], index: 18, kind: output, shape index: {3}]
  %19 = xla_tuple %s15, %s16, %s17, %s18
  %s20 = sld [smem:[#allocation0]]
  $region94: #{model_forward.1} parent=0
    _
  %s22 = ssub.s32 1, %s20
  %s23 = scalar_select 0, %s22, %s20
  $region1: #{model_forward.1} parent=0
    #allocation2 [shape = 'u8[8192]{0}', space=vmem, size = 0x2000, scoped, tag = 'output window, operand 1, single buffered']
    #allocation3 [shape = 's32[1]{0}', space=sflag, size = 0x4, scoped, tag = 'scoped memory for model_forward.1']
    #allocation4 [shape = 'u8[8192]{0}', space=vmem, size = 0x2000, scoped, tag = 'output window, operand 2, single buffered']
    #allocation5 [shape = 's32[1]{0}', space=sflag, size = 0x4, scoped, tag = 'scoped memory for model_forward.1']
    #allocation6 [shape = 'u8[4096]{0}', space=vmem, size = 0x1000, scoped, tag = 'output window, operand 3, single buffered']
    %24 = vsyncpa [#allocation3], 0
    %25 = vsyncpa [#allocation5], 0
    // Predicated region
    $region2: #{model_forward.1} parent=1 // pred_check
      _
    $region3: #{model_forward.1} parent=1 // pred_check_branch
      %27 = sbr.rel (0) target = $region5
    $region4: #{model_forward.1} parent=1 // pred_region
      _
    $region5: #{model_forward.1} parent=1 // pred_fallthru
      _
    // Predicated region
    $region6: #{model_forward.1} parent=1 // pred_check
      _
    $region7: #{model_forward.1} parent=1 // pred_check_branch
      %29 = sbr.rel (0) target = $region9
    $region8: #{model_forward.1} parent=1 // pred_region
      _
    $region9: #{model_forward.1} parent=1 // pred_fallthru
      _
    // Predicated region
    $region10: #{model_forward.1} parent=1 // pred_check
      _
    $region11: #{model_forward.1} parent=1 // pred_check_branch
      %31 = sbr.rel (0) target = $region13
    $region12: #{model_forward.1} parent=1 // pred_region
      _
    $region13: #{model_forward.1} parent=1 // pred_fallthru
      _
    // Predicated region
    $region14: #{model_forward.1} parent=1 // pred_check
      _
    $region15: #{model_forward.1} parent=1 // pred_check_branch
      %33 = sbr.rel (0) target = $region17
    $region16: #{model_forward.1} parent=1 // pred_region
      _
    $region17: #{model_forward.1} parent=1 // pred_fallthru
      _
    // Predicated region
    $region18: #{model_forward.1} parent=1 // pred_check
      _
    $region19: #{model_forward.1} parent=1 // pred_check_branch
      %35 = sbr.rel (0) target = $region21
    $region20: #{model_forward.1} parent=1 // pred_region
      _
    $region21: #{model_forward.1} parent=1 // pred_fallthru
      _
    // Predicated region
    $region22: #{model_forward.1} parent=1 // pred_check
      _
    $region23: #{model_forward.1} parent=1 // pred_check_branch
      %37 = sbr.rel (0) target = $region25
    $region24: #{model_forward.1} parent=1 // pred_region
      _
    $region25: #{model_forward.1} parent=1 // pred_fallthru
      _
    // Predicated region
    $region26: #{model_forward.1} parent=1 // pred_check
      _
    $region27: #{model_forward.1} parent=1 // pred_check_branch
      %39 = sbr.rel (0) target = $region29
    $region28: #{model_forward.1} parent=1 // pred_region
      _
    $region29: #{model_forward.1} parent=1 // pred_fallthru
      _
    // Predicated region
    $region30: #{model_forward.1} parent=1 // pred_check
      _
    $region31: #{model_forward.1} parent=1 // pred_check_branch
      %41 = sbr.rel (0) target = $region33
    $region32: #{model_forward.1} parent=1 // pred_region
      _
    $region33: #{model_forward.1} parent=1 // pred_fallthru
      _
    // Predicated region
    $region34: #{model_forward.1} parent=1 // pred_check
      _
    $region35: #{model_forward.1} parent=1 // pred_check_branch
      %43 = sbr.rel (0) target = $region37
    $region36: #{model_forward.1} parent=1 // pred_region
      _
    $region37: #{model_forward.1} parent=1 // pred_fallthru
      _
    // Predicated region
    $region38: #{model_forward.1} parent=1 // pred_check
      _
    $region39: #{model_forward.1} parent=1 // pred_check_branch
      %45 = sbr.rel (0) target = $region41
    $region40: #{model_forward.1} parent=1 // pred_region
      _
    $region41: #{model_forward.1} parent=1 // pred_fallthru
      _
    // Predicated region
    $region42: #{model_forward.1} parent=1 // pred_check
      _
    $region43: #{model_forward.1} parent=1 // pred_check_branch
      %47 = sbr.rel (0) target = $region45
    $region44: #{model_forward.1} parent=1 // pred_region
      _
    $region45: #{model_forward.1} parent=1 // pred_fallthru
      _
    // Predicated region
    $region46: #{model_forward.1} parent=1 // pred_check
      _
    $region47: #{model_forward.1} parent=1 // pred_check_branch
      %49 = sbr.rel (0) target = $region49
    $region48: #{model_forward.1} parent=1 // pred_region
      _
    $region49: #{model_forward.1} parent=1 // pred_fallthru
      _
    // Predicated region
    $region50: #{model_forward.1} parent=1 // pred_check
      _
    $region51: #{model_forward.1} parent=1 // pred_check_branch
      %51 = sbr.rel (0) target = $region53
    $region52: #{model_forward.1} parent=1 // pred_region
      _
    $region53: #{model_forward.1} parent=1 // pred_fallthru
      _
    // Predicated region
    $region54: #{model_forward.1} parent=1 // pred_check
      _
    $region55: #{model_forward.1} parent=1 // pred_check_branch
      %53 = sbr.rel (0) target = $region57
    $region56: #{model_forward.1} parent=1 // pred_region
      _
    $region57: #{model_forward.1} parent=1 // pred_fallthru
      _
    // Predicated region
    $region58: #{model_forward.1} parent=1 // pred_check
      _
    $region59: #{model_forward.1} parent=1 // pred_check_branch
      %55 = sbr.rel (0) target = $region61
    $region60: #{model_forward.1} parent=1 // pred_region
      _
    $region61: #{model_forward.1} parent=1 // pred_fallthru
      _
    %v57 = vld [vmem:[%s0] sm:$0xff]
    %v58 = vld [vmem:[%s0 + $0x8] sm:$0xff]
    %v59 = vld [vmem:[%s1] sm:$0xff]
    %v60 = vld [vmem:[%s1 + $0x8] sm:$0xff]
    %v61 = vld [vmem:[%s2] sm:$0xf]
    %v62 = vlaneseq
    %v63 = vshrl.u32 %v62, 7
    %v64 = vadd.s32 %v63, 8
    %v65 = vlaneseq
    %v66 = vshrl.u32 %v65, 7
    %v67 = vsub.s32 1, %v66
    %v68 = vrot.slane %v61, %v67
    %vm69 = vcmp.eq.s32.totalorder %v63, %v68
    %vm70 = vcmp.eq.s32.totalorder %v64, %v68
    %v71 = vsel %vm69, 1, 0
    %v72 = vsel %vm70, 1, 0
    %v73 = vcvt.s32.f32 %v71
    %v74 = vcvt.s32.f32 %v72
    %v75 = vpack.c.bf16 %v74, %v73
    %v76 = vlaneseq
    %v77 = vshrl.u32 %v76, 7
    %v78 = vsub.s32 0, %v77
    %v79 = vrot.slane %v61, %v78
    %vm80 = vcmp.eq.s32.totalorder %v63, %v79
    %vm81 = vcmp.eq.s32.totalorder %v64, %v79
    %v82 = vsel %vm80, 1, 0
    %v83 = vsel %vm81, 1, 0
    %v84 = vcvt.s32.f32 %v82
    %v85 = vcvt.s32.f32 %v83
    %v86 = vpack.c.bf16 %v85, %v84
    %vm87 = vcmask 261120
    %v89 = vsel %vm87, %v75, 0
    %v92 = vsel %vm87, %v86, 0
    %94 = vmatprep.subr.bf16.mxu0 0
    %95 = vmatpush1.bf16.xpose.msra.mxu0 %v92
    %96 = vmatprep.subr.bf16.mxu0 0
    %97 = vmatpush1.bf16.xpose.msra.mxu0 0
    %98 = vmatprep.subr.bf16.mxu0 0
    %99 = vmatpush1.bf16.xpose.msra.mxu0 0
    %100 = vmatprep.subr.bf16.mxu0 0
    %101 = vmatpush1.bf16.xpose.msra.mxu0 0
    %102 = vmatprep.subr.bf16.mxu0 0
    %103 = vmatpush1.bf16.xpose.msra.mxu0 0
    %104 = vmatprep.subr.bf16.mxu0 0
    %105 = vmatpush1.bf16.xpose.msra.mxu0 0
    %106 = vmatprep.subr.bf16.mxu0 0
    %107 = vmatpush1.bf16.xpose.msra.mxu0 0
    %108 = vmatprep.subr.bf16.mxu0 0
    %109 = vmatpush1.bf16.xpose.msra.mxu0 0
    %110 = vmatprep.subr.bf16.mxu0 0
    %111 = vmatpush1.bf16.xpose.msra.mxu0 0
    %112 = vmatprep.subr.bf16.mxu0 0
    %113 = vmatpush1.bf16.xpose.msra.mxu0 0
    %114 = vmatprep.subr.bf16.mxu0 0
    %115 = vmatpush1.bf16.xpose.msra.mxu0 0
    %116 = vmatprep.subr.bf16.mxu0 0
    %117 = vmatpush1.bf16.xpose.msra.mxu0 0
    %118 = vmatprep.subr.bf16.mxu0 0
    %119 = vmatpush1.bf16.xpose.msra.mxu0 0
    %120 = vmatprep.subr.bf16.mxu0 0
    %121 = vmatpush1.bf16.xpose.msra.mxu0 0
    %122 = vmatprep.subr.bf16.mxu0 0
    %123 = vmatpush1.bf16.xpose.msra.mxu0 0
    %124 = vmatprep.subr.bf16.mxu0 0
    %125 = vmatpush1.bf16.xpose.msra.mxu0 0
    %126 = vmatprep.mubr.bf16.mxu0 0
    %127 = vmatmul.mubr.bf16.gmra.mrb[0].mxu0 %v89
    %v128 = vpop.f32.mrb[0].mxu0
    %v129 = vadd.f32 0.0, %v128
    %v130 = vpop.f32.mrb[0].mxu0
    %v131 = vpop.f32.mrb[0].mxu0
    %v132 = vadd.f32 0.0, %v131
    %v133 = vpop.f32.mrb[0].mxu0
    %134 = vdwg.mxu0
    %vm135 = vcmask 130048
    %v136 = vsel %vm135, %v129, 0.0
    %137 = vadd.xlane.f32.xlu0 %v136
    %v138 = vpop.xlane.xlu0 %137
    %v139 = vsel %vm135, %v132, 0.0
    %140 = vadd.xlane.f32.xlu0 %v139
    %v141 = vpop.xlane.xlu0 %140
    %v142 = vmax.f32 %v138, 1.0
    %v143 = vmax.f32 %v141, 1.0
    %v144 = vrcp.pop %v142
    %v145 = vmul.f32 1.0, %v144
    %v146 = vrcp.pop %v143
    %v147 = vmul.f32 1.0, %v146
    %v148 = vlaneseq
    %v149 = vshrl.u32 %v148, 7
    %v150 = vsub.s32 3, %v149
    %v151 = vrot.slane %v61, %v150
    %vm152 = vcmp.eq.s32.totalorder %v63, %v151
    %vm153 = vcmp.eq.s32.totalorder %v64, %v151
    %v154 = vsel %vm152, 1, 0
    %v155 = vsel %vm153, 1, 0
    %v156 = vcvt.s32.f32 %v154
    %v157 = vcvt.s32.f32 %v155
    %v158 = vpack.c.bf16 %v157, %v156
    %v159 = vlaneseq
    %v160 = vshrl.u32 %v159, 7
    %v161 = vsub.s32 2, %v160
    %v162 = vrot.slane %v61, %v161
    %vm163 = vcmp.eq.s32.totalorder %v63, %v162
    %vm164 = vcmp.eq.s32.totalorder %v64, %v162
    %v165 = vsel %vm163, 1, 0
    %v166 = vsel %vm164, 1, 0
    %v167 = vcvt.s32.f32 %v165
    %v168 = vcvt.s32.f32 %v166
    %v169 = vpack.c.bf16 %v168, %v167
    %v171 = vsel %vm87, %v158, 0
    %v174 = vsel %vm87, %v169, 0
    %176 = vmatprep.subr.bf16.mxu0 0
    %177 = vmatpush1.bf16.xpose.msra.mxu0 %v174
    %178 = vmatprep.subr.bf16.mxu0 0
    %179 = vmatpush1.bf16.xpose.msra.mxu0 0
    %180 = vmatprep.subr.bf16.mxu0 0
    %181 = vmatpush1.bf16.xpose.msra.mxu0 0
    %182 = vmatprep.subr.bf16.mxu0 0
    %183 = vmatpush1.bf16.xpose.msra.mxu0 0
    %184 = vmatprep.subr.bf16.mxu0 0
    %185 = vmatpush1.bf16.xpose.msra.mxu0 0
    %186 = vmatprep.subr.bf16.mxu0 0
    %187 = vmatpush1.bf16.xpose.msra.mxu0 0
    %188 = vmatprep.subr.bf16.mxu0 0
    %189 = vmatpush1.bf16.xpose.msra.mxu0 0
    %190 = vmatprep.subr.bf16.mxu0 0
    %191 = vmatpush1.bf16.xpose.msra.mxu0 0
    %192 = vmatprep.subr.bf16.mxu0 0
    %193 = vmatpush1.bf16.xpose.msra.mxu0 0
    %194 = vmatprep.subr.bf16.mxu0 0
    %195 = vmatpush1.bf16.xpose.msra.mxu0 0
    %196 = vmatprep.subr.bf16.mxu0 0
    %197 = vmatpush1.bf16.xpose.msra.mxu0 0
    %198 = vmatprep.subr.bf16.mxu0 0
    %199 = vmatpush1.bf16.xpose.msra.mxu0 0
    %200 = vmatprep.subr.bf16.mxu0 0
    %201 = vmatpush1.bf16.xpose.msra.mxu0 0
    %202 = vmatprep.subr.bf16.mxu0 0
    %203 = vmatpush1.bf16.xpose.msra.mxu0 0
    %204 = vmatprep.subr.bf16.mxu0 0
    %205 = vmatpush1.bf16.xpose.msra.mxu0 0
    %206 = vmatprep.subr.bf16.mxu0 0
    %207 = vmatpush1.bf16.xpose.msra.mxu0 0
    %208 = vmatprep.mubr.bf16.mxu0 0
    %209 = vmatmul.mubr.bf16.gmra.mrb[0].mxu0 %v171
    %v210 = vpop.f32.mrb[0].mxu0
    %v211 = vadd.f32 0.0, %v210
    %v212 = vpop.f32.mrb[0].mxu0
    %v213 = vpop.f32.mrb[0].mxu0
    %v214 = vadd.f32 0.0, %v213
    %v215 = vpop.f32.mrb[0].mxu0
    %216 = vdwg.mxu0
    %v217 = vsel %vm135, %v211, 0.0
    %218 = vadd.xlane.f32.xlu0 %v217
    %v219 = vpop.xlane.xlu0 %218
    %v220 = vsel %vm135, %v214, 0.0
    %221 = vadd.xlane.f32.xlu0 %v220
    %v222 = vpop.xlane.xlu0 %221
    %v223 = vmax.f32 %v219, 1.0
    %v224 = vmax.f32 %v222, 1.0
    %v225 = vrcp.pop %v223
    %v226 = vmul.f32 1.0, %v225
    %v227 = vrcp.pop %v224
    %v228 = vmul.f32 1.0, %v227
    %v229 = vld [vmem:[%s9] sm:$0x3]
    %v230 = vld [vmem:[%s11] sm:$0x7]
    %v231 = vld [vmem:[%s5] sm:$0xff]
    %v232 = vld [vmem:[%s6] sm:$0xff]
    %v233 = vld [vmem:[%s6 + $0x8] sm:$0xf]
    %v235 = vsel %vm135, %v129, 0
    %v238 = vsel %vm135, %v132, 0
    %240 = vmatprep.subr.mxu0 0.0
    %241 = vmatpush1.msra.mxu0 %v57
    %242 = vmatprep.subr.mxu0 0.0
    %243 = vmatpush1.msra.mxu0 %v58
    %244 = vmatprep.subr.mxu0 0.0
    %245 = vmatpush1.msra.mxu0 0.0
    %246 = vmatprep.subr.mxu0 0.0
    %247 = vmatpush1.msra.mxu0 0.0
    %248 = vmatprep.subr.mxu0 0.0
    %249 = vmatpush1.msra.mxu0 0.0
    %250 = vmatprep.subr.mxu0 0.0
    %251 = vmatpush1.msra.mxu0 0.0
    %252 = vmatprep.subr.mxu0 0.0
    %253 = vmatpush1.msra.mxu0 0.0
    %254 = vmatprep.subr.mxu0 0.0
    %255 = vmatpush1.msra.mxu0 0.0
    %256 = vmatprep.subr.mxu0 0.0
    %257 = vmatpush1.msra.mxu0 0.0
    %258 = vmatprep.subr.mxu0 0.0
    %259 = vmatpush1.msra.mxu0 0.0
    %260 = vmatprep.subr.mxu0 0.0
    %261 = vmatpush1.msra.mxu0 0.0
    %262 = vmatprep.subr.mxu0 0.0
    %263 = vmatpush1.msra.mxu0 0.0
    %264 = vmatprep.subr.mxu0 0.0
    %265 = vmatpush1.msra.mxu0 0.0
    %266 = vmatprep.subr.mxu0 0.0
    %267 = vmatpush1.msra.mxu0 0.0
    %268 = vmatprep.subr.mxu0 0.0
    %269 = vmatpush1.msra.mxu0 0.0
    %270 = vmatprep.subr.mxu0 0.0
    %271 = vmatpush1.msra.mxu0 0.0
    %272 = vmatprep.subr.mxu0 0.0
    %273 = vmatpush1.msra.mxu0 0.0
    %274 = vmatprep.subr.mxu0 0.0
    %275 = vmatpush1.msra.mxu0 0.0
    %276 = vmatprep.subr.mxu0 0.0
    %277 = vmatpush1.msra.mxu0 0.0
    %278 = vmatprep.subr.mxu0 0.0
    %279 = vmatpush1.msra.mxu0 0.0
    %280 = vmatprep.subr.mxu0 0.0
    %281 = vmatpush1.msra.mxu0 0.0
    %282 = vmatprep.subr.mxu0 0.0
    %283 = vmatpush1.msra.mxu0 0.0
    %284 = vmatprep.subr.mxu0 0.0
    %285 = vmatpush1.msra.mxu0 0.0
    %286 = vmatprep.subr.mxu0 0.0
    %287 = vmatpush1.msra.mxu0 0.0
    %288 = vmatprep.subr.mxu0 0.0
    %289 = vmatpush1.msra.mxu0 0.0
    %290 = vmatprep.subr.mxu0 0.0
    %291 = vmatpush1.msra.mxu0 0.0
    %292 = vmatprep.subr.mxu0 0.0
    %293 = vmatpush1.msra.mxu0 0.0
    %294 = vmatprep.subr.mxu0 0.0
    %295 = vmatpush1.msra.mxu0 0.0
    %296 = vmatprep.subr.mxu0 0.0
    %297 = vmatpush1.msra.mxu0 0.0
    %298 = vmatprep.subr.mxu0 0.0
    %299 = vmatpush1.msra.mxu0 0.0
    %300 = vmatprep.subr.mxu0 0.0
    %301 = vmatpush1.msra.mxu0 0.0
    %302 = vmatprep.subr.mxu0 0.0
    %303 = vmatpush1.msra.mxu0 0.0
    %304 = vmatprep.mubr.f32.mxu0 0.0
    %305 = vmatmul.mubr.f32.gmra.mrb[0].mxu0 %v235
    %v306 = vpop.f32.mrb[0].mxu0
    %v307 = vadd.f32 0.0, %v306
    %v308 = vpop.f32.mrb[0].mxu0
    %309 = vmatprep.mubr.f32.mxu0 0.0
    %310 = vmatmul.mubr.f32.gmra.mrb[0].mxu0 %v238
    %v311 = vpop.f32.mrb[0].mxu0
    %v312 = vadd.f32 0.0, %v311
    %v313 = vpop.f32.mrb[0].mxu0
    %314 = vdwg.mxu0
    %vm315 = vcmask 64512
    %v317 = vsel %vm315, %v307, 0
    %v320 = vsel %vm315, %v312, 0
    %322 = vmatprep.subr.mxu0 0.0
    %323 = vmatpush1.msra.mxu0 %v231
    %324 = vmatprep.subr.mxu0 0.0
    %325 = vmatpush1.msra.mxu0 0.0
    %326 = vmatprep.subr.mxu0 0.0
    %327 = vmatpush1.msra.mxu0 0.0
    %328 = vmatprep.subr.mxu0 0.0
    %329 = vmatpush1.msra.mxu0 0.0
    %330 = vmatprep.subr.mxu0 0.0
    %331 = vmatpush1.msra.mxu0 0.0
    %332 = vmatprep.subr.mxu0 0.0
    %333 = vmatpush1.msra.mxu0 0.0
    %334 = vmatprep.subr.mxu0 0.0
    %335 = vmatpush1.msra.mxu0 0.0
    %336 = vmatprep.subr.mxu0 0.0
    %337 = vmatpush1.msra.mxu0 0.0
    %338 = vmatprep.subr.mxu0 0.0
    %339 = vmatpush1.msra.mxu0 0.0
    %340 = vmatprep.subr.mxu0 0.0
    %341 = vmatpush1.msra.mxu0 0.0
    %342 = vmatprep.subr.mxu0 0.0
    %343 = vmatpush1.msra.mxu0 0.0
    %344 = vmatprep.subr.mxu0 0.0
    %345 = vmatpush1.msra.mxu0 0.0
    %346 = vmatprep.subr.mxu0 0.0
    %347 = vmatpush1.msra.mxu0 0.0
    %348 = vmatprep.subr.mxu0 0.0
    %349 = vmatpush1.msra.mxu0 0.0
    %350 = vmatprep.subr.mxu0 0.0
    %351 = vmatpush1.msra.mxu0 0.0
    %352 = vmatprep.subr.mxu0 0.0
    %353 = vmatpush1.msra.mxu0 0.0
    %354 = vmatprep.subr.mxu0 0.0
    %355 = vmatpush1.msra.mxu0 0.0
    %356 = vmatprep.subr.mxu0 0.0
    %357 = vmatpush1.msra.mxu0 0.0
    %358 = vmatprep.subr.mxu0 0.0
    %359 = vmatpush1.msra.mxu0 0.0
    %360 = vmatprep.subr.mxu0 0.0
    %361 = vmatpush1.msra.mxu0 0.0
    %362 = vmatprep.subr.mxu0 0.0
    %363 = vmatpush1.msra.mxu0 0.0
    %364 = vmatprep.subr.mxu0 0.0
    %365 = vmatpush1.msra.mxu0 0.0
    %366 = vmatprep.subr.mxu0 0.0
    %367 = vmatpush1.msra.mxu0 0.0
    %368 = vmatprep.subr.mxu0 0.0
    %369 = vmatpush1.msra.mxu0 0.0
    %370 = vmatprep.subr.mxu0 0.0
    %371 = vmatpush1.msra.mxu0 0.0
    %372 = vmatprep.subr.mxu0 0.0
    %373 = vmatpush1.msra.mxu0 0.0
    %374 = vmatprep.subr.mxu0 0.0
    %375 = vmatpush1.msra.mxu0 0.0
    %376 = vmatprep.subr.mxu0 0.0
    %377 = vmatpush1.msra.mxu0 0.0
    %378 = vmatprep.subr.mxu0 0.0
    %379 = vmatpush1.msra.mxu0 0.0
    %380 = vmatprep.subr.mxu0 0.0
    %381 = vmatpush1.msra.mxu0 0.0
    %382 = vmatprep.subr.mxu0 0.0
    %383 = vmatpush1.msra.mxu0 0.0
    %384 = vmatprep.subr.mxu0 0.0
    %385 = vmatpush1.msra.mxu0 0.0
    %386 = vmatprep.mubr.f32.mxu0 0.0
    %387 = vmatmul.mubr.f32.gmra.mrb[0].mxu0 %v317
    %v388 = vpop.f32.mrb[0].mxu0
    %v389 = vadd.f32 0.0, %v388
    %v390 = vpop.f32.mrb[0].mxu0
    %391 = vmatprep.mubr.f32.mxu0 0.0
    %392 = vmatmul.mubr.f32.gmra.mrb[0].mxu0 %v320
    %v393 = vpop.f32.mrb[0].mxu0
    %v394 = vadd.f32 0.0, %v393
    %v395 = vpop.f32.mrb[0].mxu0
    %396 = vdwg.mxu0
    %v397 = vmul.f32 %v145, %v389
    %v398 = vmul.f32 %v147, %v394
    %vm399 = vcmask 97280
    %v401 = vsel %vm399, %v59, 0
    %v404 = vsel %vm399, %v60, 0
    %vm406 = vcmask 1043456
    %v408 = vsel %vm406, %v233, 0
    %410 = vmatprep.subr.mxu0 0.0
    %411 = vmatpush1.msra.mxu0 %v232
    %412 = vmatprep.subr.mxu0 0.0
    %413 = vmatpush1.msra.mxu0 %v408
    %414 = vmatprep.subr.mxu0 0.0
    %415 = vmatpush1.msra.mxu0 0.0
    %416 = vmatprep.subr.mxu0 0.0
    %417 = vmatpush1.msra.mxu0 0.0
    %418 = vmatprep.subr.mxu0 0.0
    %419 = vmatpush1.msra.mxu0 0.0
    %420 = vmatprep.subr.mxu0 0.0
    %421 = vmatpush1.msra.mxu0 0.0
    %422 = vmatprep.subr.mxu0 0.0
    %423 = vmatpush1.msra.mxu0 0.0
    %424 = vmatprep.subr.mxu0 0.0
    %425 = vmatpush1.msra.mxu0 0.0
    %426 = vmatprep.subr.mxu0 0.0
    %427 = vmatpush1.msra.mxu0 0.0
    %428 = vmatprep.subr.mxu0 0.0
    %429 = vmatpush1.msra.mxu0 0.0
    %430 = vmatprep.subr.mxu0 0.0
    %431 = vmatpush1.msra.mxu0 0.0
    %432 = vmatprep.subr.mxu0 0.0
    %433 = vmatpush1.msra.mxu0 0.0
    %434 = vmatprep.subr.mxu0 0.0
    %435 = vmatpush1.msra.mxu0 0.0
    %436 = vmatprep.subr.mxu0 0.0
    %437 = vmatpush1.msra.mxu0 0.0
    %438 = vmatprep.subr.mxu0 0.0
    %439 = vmatpush1.msra.mxu0 0.0
    %440 = vmatprep.subr.mxu0 0.0
    %441 = vmatpush1.msra.mxu0 0.0
    %442 = vmatprep.subr.mxu0 0.0
    %443 = vmatpush1.msra.mxu0 0.0
    %444 = vmatprep.subr.mxu0 0.0
    %445 = vmatpush1.msra.mxu0 0.0
    %446 = vmatprep.subr.mxu0 0.0
    %447 = vmatpush1.msra.mxu0 0.0
    %448 = vmatprep.subr.mxu0 0.0
    %449 = vmatpush1.msra.mxu0 0.0
    %450 = vmatprep.subr.mxu0 0.0
    %451 = vmatpush1.msra.mxu0 0.0
    %452 = vmatprep.subr.mxu0 0.0
    %453 = vmatpush1.msra.mxu0 0.0
    %454 = vmatprep.subr.mxu0 0.0
    %455 = vmatpush1.msra.mxu0 0.0
    %456 = vmatprep.subr.mxu0 0.0
    %457 = vmatpush1.msra.mxu0 0.0
    %458 = vmatprep.subr.mxu0 0.0
    %459 = vmatpush1.msra.mxu0 0.0
    %460 = vmatprep.subr.mxu0 0.0
    %461 = vmatpush1.msra.mxu0 0.0
    %462 = vmatprep.subr.mxu0 0.0
    %463 = vmatpush1.msra.mxu0 0.0
    %464 = vmatprep.subr.mxu0 0.0
    %465 = vmatpush1.msra.mxu0 0.0
    %466 = vmatprep.subr.mxu0 0.0
    %467 = vmatpush1.msra.mxu0 0.0
    %468 = vmatprep.subr.mxu0 0.0
    %469 = vmatpush1.msra.mxu0 0.0
    %470 = vmatprep.subr.mxu0 0.0
    %471 = vmatpush1.msra.mxu0 0.0
    %472 = vmatprep.subr.mxu0 0.0
    %473 = vmatpush1.msra.mxu0 0.0
    %474 = vmatprep.mubr.f32.mxu0 0.0
    %475 = vmatmul.mubr.f32.gmra.mrb[0].mxu0 %v401
    %v476 = vpop.f32.mrb[0].mxu0
    %v477 = vadd.f32 0.0, %v476
    %v478 = vpop.f32.mrb[0].mxu0
    %479 = vmatprep.mubr.f32.mxu0 0.0
    %480 = vmatmul.mubr.f32.gmra.mrb[0].mxu0 %v404
    %v481 = vpop.f32.mrb[0].mxu0
    %v482 = vadd.f32 0.0, %v481
    %v483 = vpop.f32.mrb[0].mxu0
    %484 = vdwg.mxu0
    %v485 = vadd.f32 %v397, %v477
    %v486 = vadd.f32 %v398, %v482
    %v487 = vlaneseq
    %v488 = vshrl.u32 %v487, 7
    %v489 = vsub.s32 0, %v488
    %v490 = vrot.slane %v229, %v489
    %v491 = vadd.f32 %v485, %v490
    %v492 = vadd.f32 %v486, %v490
    %v493 = vmax.f32 %v491, 0.0
    %v494 = vmax.f32 %v492, 0.0
    %v495 = vld [vmem:[%s7] sm:$0xff]
    %v496 = vld [vmem:[%s7 + $0x8] sm:$0xf]
    %v497 = vld [vmem:[%s8] sm:$0xff]
    %v499 = vsel %vm135, %v211, 0
    %v502 = vsel %vm135, %v214, 0
    %504 = vmatprep.subr.mxu0 0.0
    %505 = vmatpush1.msra.mxu0 %v59
    %506 = vmatprep.subr.mxu0 0.0
    %507 = vmatpush1.msra.mxu0 %v60
    %508 = vmatprep.subr.mxu0 0.0
    %509 = vmatpush1.msra.mxu0 0.0
    %510 = vmatprep.subr.mxu0 0.0
    %511 = vmatpush1.msra.mxu0 0.0
    %512 = vmatprep.subr.mxu0 0.0
    %513 = vmatpush1.msra.mxu0 0.0
    %514 = vmatprep.subr.mxu0 0.0
    %515 = vmatpush1.msra.mxu0 0.0
    %516 = vmatprep.subr.mxu0 0.0
    %517 = vmatpush1.msra.mxu0 0.0
    %518 = vmatprep.subr.mxu0 0.0
    %519 = vmatpush1.msra.mxu0 0.0
    %520 = vmatprep.subr.mxu0 0.0
    %521 = vmatpush1.msra.mxu0 0.0
    %522 = vmatprep.subr.mxu0 0.0
    %523 = vmatpush1.msra.mxu0 0.0
    %524 = vmatprep.subr.mxu0 0.0
    %525 = vmatpush1.msra.mxu0 0.0
    %526 = vmatprep.subr.mxu0 0.0
    %527 = vmatpush1.msra.mxu0 0.0
    %528 = vmatprep.subr.mxu0 0.0
    %529 = vmatpush1.msra.mxu0 0.0
    %530 = vmatprep.subr.mxu0 0.0
    %531 = vmatpush1.msra.mxu0 0.0
    %532 = vmatprep.subr.mxu0 0.0
    %533 = vmatpush1.msra.mxu0 0.0
    %534 = vmatprep.subr.mxu0 0.0
    %535 = vmatpush1.msra.mxu0 0.0
    %536 = vmatprep.subr.mxu0 0.0
    %537 = vmatpush1.msra.mxu0 0.0
    %538 = vmatprep.subr.mxu0 0.0
    %539 = vmatpush1.msra.mxu0 0.0
    %540 = vmatprep.subr.mxu0 0.0
    %541 = vmatpush1.msra.mxu0 0.0
    %542 = vmatprep.subr.mxu0 0.0
    %543 = vmatpush1.msra.mxu0 0.0
    %544 = vmatprep.subr.mxu0 0.0
    %545 = vmatpush1.msra.mxu0 0.0
    %546 = vmatprep.subr.mxu0 0.0
    %547 = vmatpush1.msra.mxu0 0.0
    %548 = vmatprep.subr.mxu0 0.0
    %549 = vmatpush1.msra.mxu0 0.0
    %550 = vmatprep.subr.mxu0 0.0
    %551 = vmatpush1.msra.mxu0 0.0
    %552 = vmatprep.subr.mxu0 0.0
    %553 = vmatpush1.msra.mxu0 0.0
    %554 = vmatprep.subr.mxu0 0.0
    %555 = vmatpush1.msra.mxu0 0.0
    %556 = vmatprep.subr.mxu0 0.0
    %557 = vmatpush1.msra.mxu0 0.0
    %558 = vmatprep.subr.mxu0 0.0
    %559 = vmatpush1.msra.mxu0 0.0
    %560 = vmatprep.subr.mxu0 0.0
    %561 = vmatpush1.msra.mxu0 0.0
    %562 = vmatprep.subr.mxu0 0.0
    %563 = vmatpush1.msra.mxu0 0.0
    %564 = vmatprep.subr.mxu0 0.0
    %565 = vmatpush1.msra.mxu0 0.0
    %566 = vmatprep.subr.mxu0 0.0
    %567 = vmatpush1.msra.mxu0 0.0
    %568 = vmatprep.mubr.f32.mxu0 0.0
    %569 = vmatmul.mubr.f32.gmra.mrb[0].mxu0 %v499
    %v570 = vpop.f32.mrb[0].mxu0
    %v571 = vadd.f32 0.0, %v570
    %v572 = vpop.f32.mrb[0].mxu0
    %573 = vmatprep.mubr.f32.mxu0 0.0
    %574 = vmatmul.mubr.f32.gmra.mrb[0].mxu0 %v502
    %v575 = vpop.f32.mrb[0].mxu0
    %v576 = vadd.f32 0.0, %v575
    %v577 = vpop.f32.mrb[0].mxu0
    %578 = vdwg.mxu0
    %v580 = vsel %vm399, %v571, 0
    %v583 = vsel %vm399, %v576, 0
    %v586 = vsel %vm406, %v496, 0
    %588 = vmatprep.subr.mxu0 0.0
    %589 = vmatpush1.msra.mxu0 %v495
    %590 = vmatprep.subr.mxu0 0.0
    %591 = vmatpush1.msra.mxu0 %v586
    %592 = vmatprep.subr.mxu0 0.0
    %593 = vmatpush1.msra.mxu0 0.0
    %594 = vmatprep.subr.mxu0 0.0
    %595 = vmatpush1.msra.mxu0 0.0
    %596 = vmatprep.subr.mxu0 0.0
    %597 = vmatpush1.msra.mxu0 0.0
    %598 = vmatprep.subr.mxu0 0.0
    %599 = vmatpush1.msra.mxu0 0.0
    %600 = vmatprep.subr.mxu0 0.0
    %601 = vmatpush1.msra.mxu0 0.0
    %602 = vmatprep.subr.mxu0 0.0
    %603 = vmatpush1.msra.mxu0 0.0
    %604 = vmatprep.subr.mxu0 0.0
    %605 = vmatpush1.msra.mxu0 0.0
    %606 = vmatprep.subr.mxu0 0.0
    %607 = vmatpush1.msra.mxu0 0.0
    %608 = vmatprep.subr.mxu0 0.0
    %609 = vmatpush1.msra.mxu0 0.0
    %610 = vmatprep.subr.mxu0 0.0
    %611 = vmatpush1.msra.mxu0 0.0
    %612 = vmatprep.subr.mxu0 0.0
    %613 = vmatpush1.msra.mxu0 0.0
    %614 = vmatprep.subr.mxu0 0.0
    %615 = vmatpush1.msra.mxu0 0.0
    %616 = vmatprep.subr.mxu0 0.0
    %617 = vmatpush1.msra.mxu0 0.0
    %618 = vmatprep.subr.mxu0 0.0
    %619 = vmatpush1.msra.mxu0 0.0
    %620 = vmatprep.subr.mxu0 0.0
    %621 = vmatpush1.msra.mxu0 0.0
    %622 = vmatprep.subr.mxu0 0.0
    %623 = vmatpush1.msra.mxu0 0.0
    %624 = vmatprep.subr.mxu0 0.0
    %625 = vmatpush1.msra.mxu0 0.0
    %626 = vmatprep.subr.mxu0 0.0
    %627 = vmatpush1.msra.mxu0 0.0
    %628 = vmatprep.subr.mxu0 0.0
    %629 = vmatpush1.msra.mxu0 0.0
    %630 = vmatprep.subr.mxu0 0.0
    %631 = vmatpush1.msra.mxu0 0.0
    %632 = vmatprep.subr.mxu0 0.0
    %633 = vmatpush1.msra.mxu0 0.0
    %634 = vmatprep.subr.mxu0 0.0
    %635 = vmatpush1.msra.mxu0 0.0
    %636 = vmatprep.subr.mxu0 0.0
    %637 = vmatpush1.msra.mxu0 0.0
    %638 = vmatprep.subr.mxu0 0.0
    %639 = vmatpush1.msra.mxu0 0.0
    %640 = vmatprep.subr.mxu0 0.0
    %641 = vmatpush1.msra.mxu0 0.0
    %642 = vmatprep.subr.mxu0 0.0
    %643 = vmatpush1.msra.mxu0 0.0
    %644 = vmatprep.subr.mxu0 0.0
    %645 = vmatpush1.msra.mxu0 0.0
    %646 = vmatprep.subr.mxu0 0.0
    %647 = vmatpush1.msra.mxu0 0.0
    %648 = vmatprep.subr.mxu0 0.0
    %649 = vmatpush1.msra.mxu0 0.0
    %650 = vmatprep.subr.mxu0 0.0
    %651 = vmatpush1.msra.mxu0 0.0
    %652 = vmatprep.mubr.f32.mxu0 0.0
    %653 = vmatmul.mubr.f32.gmra.mrb[0].mxu0 %v580
    %v654 = vpop.f32.mrb[0].mxu0
    %v655 = vadd.f32 0.0, %v654
    %v656 = vpop.f32.mrb[0].mxu0
    %657 = vmatprep.mubr.f32.mxu0 0.0
    %658 = vmatmul.mubr.f32.gmra.mrb[0].mxu0 %v583
    %v659 = vpop.f32.mrb[0].mxu0
    %v660 = vadd.f32 0.0, %v659
    %v661 = vpop.f32.mrb[0].mxu0
    %662 = vdwg.mxu0
    %v663 = vmul.f32 %v226, %v655
    %v664 = vmul.f32 %v228, %v660
    %v666 = vsel %vm315, %v57, 0
    %v669 = vsel %vm315, %v58, 0
    %671 = vmatprep.subr.mxu0 0.0
    %672 = vmatpush1.msra.mxu0 %v497
    %673 = vmatprep.subr.mxu0 0.0
    %674 = vmatpush1.msra.mxu0 0.0
    %675 = vmatprep.subr.mxu0 0.0
    %676 = vmatpush1.msra.mxu0 0.0
    %677 = vmatprep.subr.mxu0 0.0
    %678 = vmatpush1.msra.mxu0 0.0
    %679 = vmatprep.subr.mxu0 0.0
    %680 = vmatpush1.msra.mxu0 0.0
    %681 = vmatprep.subr.mxu0 0.0
    %682 = vmatpush1.msra.mxu0 0.0
    %683 = vmatprep.subr.mxu0 0.0
    %684 = vmatpush1.msra.mxu0 0.0
    %685 = vmatprep.subr.mxu0 0.0
    %686 = vmatpush1.msra.mxu0 0.0
    %687 = vmatprep.subr.mxu0 0.0
    %688 = vmatpush1.msra.mxu0 0.0
    %689 = vmatprep.subr.mxu0 0.0
    %690 = vmatpush1.msra.mxu0 0.0
    %691 = vmatprep.subr.mxu0 0.0
    %692 = vmatpush1.msra.mxu0 0.0
    %693 = vmatprep.subr.mxu0 0.0
    %694 = vmatpush1.msra.mxu0 0.0
    %695 = vmatprep.subr.mxu0 0.0
    %696 = vmatpush1.msra.mxu0 0.0
    %697 = vmatprep.subr.mxu0 0.0
    %698 = vmatpush1.msra.mxu0 0.0
    %699 = vmatprep.subr.mxu0 0.0
    %700 = vmatpush1.msra.mxu0 0.0
    %701 = vmatprep.subr.mxu0 0.0
    %702 = vmatpush1.msra.mxu0 0.0
    %703 = vmatprep.subr.mxu0 0.0
    %704 = vmatpush1.msra.mxu0 0.0
    %705 = vmatprep.subr.mxu0 0.0
    %706 = vmatpush1.msra.mxu0 0.0
    %707 = vmatprep.subr.mxu0 0.0
    %708 = vmatpush1.msra.mxu0 0.0
    %709 = vmatprep.subr.mxu0 0.0
    %710 = vmatpush1.msra.mxu0 0.0
    %711 = vmatprep.subr.mxu0 0.0
    %712 = vmatpush1.msra.mxu0 0.0
    %713 = vmatprep.subr.mxu0 0.0
    %714 = vmatpush1.msra.mxu0 0.0
    %715 = vmatprep.subr.mxu0 0.0
    %716 = vmatpush1.msra.mxu0 0.0
    %717 = vmatprep.subr.mxu0 0.0
    %718 = vmatpush1.msra.mxu0 0.0
    %719 = vmatprep.subr.mxu0 0.0
    %720 = vmatpush1.msra.mxu0 0.0
    %721 = vmatprep.subr.mxu0 0.0
    %722 = vmatpush1.msra.mxu0 0.0
    %723 = vmatprep.subr.mxu0 0.0
    %724 = vmatpush1.msra.mxu0 0.0
    %725 = vmatprep.subr.mxu0 0.0
    %726 = vmatpush1.msra.mxu0 0.0
    %727 = vmatprep.subr.mxu0 0.0
    %728 = vmatpush1.msra.mxu0 0.0
    %729 = vmatprep.subr.mxu0 0.0
    %730 = vmatpush1.msra.mxu0 0.0
    %731 = vmatprep.subr.mxu0 0.0
    %732 = vmatpush1.msra.mxu0 0.0
    %733 = vmatprep.subr.mxu0 0.0
    %734 = vmatpush1.msra.mxu0 0.0
    %735 = vmatprep.mubr.f32.mxu0 0.0
    %736 = vmatmul.mubr.f32.gmra.mrb[0].mxu0 %v666
    %v737 = vpop.f32.mrb[0].mxu0
    %v738 = vadd.f32 0.0, %v737
    %v739 = vpop.f32.mrb[0].mxu0
    %740 = vmatprep.mubr.f32.mxu0 0.0
    %741 = vmatmul.mubr.f32.gmra.mrb[0].mxu0 %v669
    %v742 = vpop.f32.mrb[0].mxu0
    %v743 = vadd.f32 0.0, %v742
    %v744 = vpop.f32.mrb[0].mxu0
    %745 = vdwg.mxu0
    %v746 = vadd.f32 %v663, %v738
    %v747 = vadd.f32 %v664, %v743
    %v748 = vlaneseq
    %v749 = vshrl.u32 %v748, 7
    %v750 = vsub.s32 1, %v749
    %v751 = vrot.slane %v229, %v750
    %v752 = vadd.f32 %v746, %v751
    %v753 = vadd.f32 %v747, %v751
    %v754 = vmax.f32 %v752, 0.0
    %v755 = vmax.f32 %v753, 0.0
    %v756 = vld [vmem:[%s10] sm:$0xff]
    %v757 = vld [vmem:[%s10 + $0x8] sm:$0xff]
    %v758 = vld [vmem:[%s10 + $0x10] sm:$0xff]
    %v759 = vld [vmem:[%s10 + $0x18] sm:$0xff]
    %s760 = scalar_lea.vmem %s10, 32
    %v761 = vld [vmem:[%s760] sm:$0xff]
    %v762 = vld [vmem:[%s760 + $0x8] sm:$0xff]
    %v763 = vld [vmem:[%s760 + $0x10] sm:$0xff]
    %v764 = vld [vmem:[%s760 + $0x18] sm:$0xff]
    %v766 = vsel %vm87, %v754, 0
    %v769 = vsel %vm87, %v755, 0
    %771 = vmatprep.subr.mxu0 0.0
    %772 = vmatpush1.msra.mxu0 %v756
    %773 = vmatprep.subr.mxu0 0.0
    %774 = vmatpush1.msra.mxu0 %v757
    %775 = vmatprep.subr.mxu0 0.0
    %776 = vmatpush1.msra.mxu0 %v758
    %777 = vmatprep.subr.mxu0 0.0
    %778 = vmatpush1.msra.mxu0 %v759
    %779 = vmatprep.subr.mxu0 0.0
    %780 = vmatpush1.msra.mxu0 0.0
    %781 = vmatprep.subr.mxu0 0.0
    %782 = vmatpush1.msra.mxu0 0.0
    %783 = vmatprep.subr.mxu0 0.0
    %784 = vmatpush1.msra.mxu0 0.0
    %785 = vmatprep.subr.mxu0 0.0
    %786 = vmatpush1.msra.mxu0 0.0
    %787 = vmatprep.subr.mxu0 0.0
    %788 = vmatpush1.msra.mxu0 0.0
    %789 = vmatprep.subr.mxu0 0.0
    %790 = vmatpush1.msra.mxu0 0.0
    %791 = vmatprep.subr.mxu0 0.0
    %792 = vmatpush1.msra.mxu0 0.0
    %793 = vmatprep.subr.mxu0 0.0
    %794 = vmatpush1.msra.mxu0 0.0
    %795 = vmatprep.subr.mxu0 0.0
    %796 = vmatpush1.msra.mxu0 0.0
    %797 = vmatprep.subr.mxu0 0.0
    %798 = vmatpush1.msra.mxu0 0.0
    %799 = vmatprep.subr.mxu0 0.0
    %800 = vmatpush1.msra.mxu0 0.0
    %801 = vmatprep.subr.mxu0 0.0
    %802 = vmatpush1.msra.mxu0 0.0
    %803 = vmatprep.subr.mxu0 0.0
    %804 = vmatpush1.msra.mxu0 0.0
    %805 = vmatprep.subr.mxu0 0.0
    %806 = vmatpush1.msra.mxu0 0.0
    %807 = vmatprep.subr.mxu0 0.0
    %808 = vmatpush1.msra.mxu0 0.0
    %809 = vmatprep.subr.mxu0 0.0
    %810 = vmatpush1.msra.mxu0 0.0
    %811 = vmatprep.subr.mxu0 0.0
    %812 = vmatpush1.msra.mxu0 0.0
    %813 = vmatprep.subr.mxu0 0.0
    %814 = vmatpush1.msra.mxu0 0.0
    %815 = vmatprep.subr.mxu0 0.0
    %816 = vmatpush1.msra.mxu0 0.0
    %817 = vmatprep.subr.mxu0 0.0
    %818 = vmatpush1.msra.mxu0 0.0
    %819 = vmatprep.subr.mxu0 0.0
    %820 = vmatpush1.msra.mxu0 0.0
    %821 = vmatprep.subr.mxu0 0.0
    %822 = vmatpush1.msra.mxu0 0.0
    %823 = vmatprep.subr.mxu0 0.0
    %824 = vmatpush1.msra.mxu0 0.0
    %825 = vmatprep.subr.mxu0 0.0
    %826 = vmatpush1.msra.mxu0 0.0
    %827 = vmatprep.subr.mxu0 0.0
    %828 = vmatpush1.msra.mxu0 0.0
    %829 = vmatprep.subr.mxu0 0.0
    %830 = vmatpush1.msra.mxu0 0.0
    %831 = vmatprep.subr.mxu0 0.0
    %832 = vmatpush1.msra.mxu0 0.0
    %833 = vmatprep.subr.mxu0 0.0
    %834 = vmatpush1.msra.mxu0 0.0
    %835 = vmatprep.mubr.f32.mxu0 0.0
    %836 = vmatmul.mubr.f32.gmra.mrb[0].mxu0 %v766
    %v837 = vpop.f32.mrb[0].mxu0
    %v838 = vadd.f32 0.0, %v837
    %v839 = vpop.f32.mrb[0].mxu0
    %840 = vmatprep.mubr.f32.mxu0 0.0
    %841 = vmatmul.mubr.f32.gmra.mrb[0].mxu0 %v769
    %v842 = vpop.f32.mrb[0].mxu0
    %v843 = vadd.f32 0.0, %v842
    %v844 = vpop.f32.mrb[0].mxu0
    %845 = vdwg.mxu0
    %846 = vmatprep.subr.mxu0 0.0
    %847 = vmatpush1.msra.mxu0 %v838
    %848 = vmatprep.subr.mxu0 0.0
    %849 = vmatpush1.msra.mxu0 %v843
    %850 = vmatprep.subr.mxu0 0.0
    %851 = vmatpush1.msra.mxu0 0.0
    %852 = vmatprep.subr.mxu0 0.0
    %853 = vmatpush1.msra.mxu0 0.0
    %854 = vmatprep.subr.mxu0 0.0
    %855 = vmatpush1.msra.mxu0 0.0
    %856 = vmatprep.subr.mxu0 0.0
    %857 = vmatpush1.msra.mxu0 0.0
    %858 = vmatprep.subr.mxu0 0.0
    %859 = vmatpush1.msra.mxu0 0.0
    %860 = vmatprep.subr.mxu0 0.0
    %861 = vmatpush1.msra.mxu0 0.0
    %862 = vmatprep.subr.mxu0 0.0
    %863 = vmatpush1.msra.mxu0 0.0
    %864 = vmatprep.subr.mxu0 0.0
    %865 = vmatpush1.msra.mxu0 0.0
    %866 = vmatprep.subr.mxu0 0.0
    %867 = vmatpush1.msra.mxu0 0.0
    %868 = vmatprep.subr.mxu0 0.0
    %869 = vmatpush1.msra.mxu0 0.0
    %870 = vmatprep.subr.mxu0 0.0
    %871 = vmatpush1.msra.mxu0 0.0
    %872 = vmatprep.subr.mxu0 0.0
    %873 = vmatpush1.msra.mxu0 0.0
    %874 = vmatprep.subr.mxu0 0.0
    %875 = vmatpush1.msra.mxu0 0.0
    %876 = vmatprep.subr.mxu0 0.0
    %877 = vmatpush1.msra.mxu0 0.0
    %878 = vmatprep.subr.mxu0 0.0
    %879 = vmatpush1.msra.mxu0 0.0
    %880 = vmatprep.subr.mxu0 0.0
    %881 = vmatpush1.msra.mxu0 0.0
    %882 = vmatprep.subr.mxu0 0.0
    %883 = vmatpush1.msra.mxu0 0.0
    %884 = vmatprep.subr.mxu0 0.0
    %885 = vmatpush1.msra.mxu0 0.0
    %886 = vmatprep.subr.mxu0 0.0
    %887 = vmatpush1.msra.mxu0 0.0
    %888 = vmatprep.subr.mxu0 0.0
    %889 = vmatpush1.msra.mxu0 0.0
    %890 = vmatprep.subr.mxu0 0.0
    %891 = vmatpush1.msra.mxu0 0.0
    %892 = vmatprep.subr.mxu0 0.0
    %893 = vmatpush1.msra.mxu0 0.0
    %894 = vmatprep.subr.mxu0 0.0
    %895 = vmatpush1.msra.mxu0 0.0
    %896 = vmatprep.subr.mxu0 0.0
    %897 = vmatpush1.msra.mxu0 0.0
    %898 = vmatprep.subr.mxu0 0.0
    %899 = vmatpush1.msra.mxu0 0.0
    %900 = vmatprep.subr.mxu0 0.0
    %901 = vmatpush1.msra.mxu0 0.0
    %902 = vmatprep.subr.mxu0 0.0
    %903 = vmatpush1.msra.mxu0 0.0
    %904 = vmatprep.subr.mxu0 0.0
    %905 = vmatpush1.msra.mxu0 0.0
    %906 = vmatprep.subr.mxu0 0.0
    %907 = vmatpush1.msra.mxu0 0.0
    %908 = vmatprep.subr.mxu0 0.0
    %909 = vmatpush1.msra.mxu0 0.0
    %910 = vmatprep.mubr.f32.mxu0 0.0
    %911 = vmatmul.mubr.f32.gmra.mrb[0].mxu0 %v235
    %v912 = vpop.f32.mrb[0].mxu0
    %v913 = vadd.f32 0.0, %v912
    %v914 = vpop.f32.mrb[0].mxu0
    %915 = vmatprep.mubr.f32.mxu0 0.0
    %916 = vmatmul.mubr.f32.gmra.mrb[0].mxu0 %v238
    %v917 = vpop.f32.mrb[0].mxu0
    %v918 = vadd.f32 0.0, %v917
    %v919 = vpop.f32.mrb[0].mxu0
    %920 = vdwg.mxu0
    %v921 = vmul.f32 %v145, %v913
    %v922 = vmul.f32 %v147, %v918
    %v924 = vsel %vm87, %v493, 0
    %v927 = vsel %vm87, %v494, 0
    %929 = vmatprep.subr.mxu0 0.0
    %930 = vmatpush1.msra.mxu0 %v761
    %931 = vmatprep.subr.mxu0 0.0
    %932 = vmatpush1.msra.mxu0 %v762
    %933 = vmatprep.subr.mxu0 0.0
    %934 = vmatpush1.msra.mxu0 %v763
    %935 = vmatprep.subr.mxu0 0.0
    %936 = vmatpush1.msra.mxu0 %v764
    %937 = vmatprep.subr.mxu0 0.0
    %938 = vmatpush1.msra.mxu0 0.0
    %939 = vmatprep.subr.mxu0 0.0
    %940 = vmatpush1.msra.mxu0 0.0
    %941 = vmatprep.subr.mxu0 0.0
    %942 = vmatpush1.msra.mxu0 0.0
    %943 = vmatprep.subr.mxu0 0.0
    %944 = vmatpush1.msra.mxu0 0.0
    %945 = vmatprep.subr.mxu0 0.0
    %946 = vmatpush1.msra.mxu0 0.0
    %947 = vmatprep.subr.mxu0 0.0
    %948 = vmatpush1.msra.mxu0 0.0
    %949 = vmatprep.subr.mxu0 0.0
    %950 = vmatpush1.msra.mxu0 0.0
    %951 = vmatprep.subr.mxu0 0.0
    %952 = vmatpush1.msra.mxu0 0.0
    %953 = vmatprep.subr.mxu0 0.0
    %954 = vmatpush1.msra.mxu0 0.0
    %955 = vmatprep.subr.mxu0 0.0
    %956 = vmatpush1.msra.mxu0 0.0
    %957 = vmatprep.subr.mxu0 0.0
    %958 = vmatpush1.msra.mxu0 0.0
    %959 = vmatprep.subr.mxu0 0.0
    %960 = vmatpush1.msra.mxu0 0.0
    %961 = vmatprep.subr.mxu0 0.0
    %962 = vmatpush1.msra.mxu0 0.0
    %963 = vmatprep.subr.mxu0 0.0
    %964 = vmatpush1.msra.mxu0 0.0
    %965 = vmatprep.subr.mxu0 0.0
    %966 = vmatpush1.msra.mxu0 0.0
    %967 = vmatprep.subr.mxu0 0.0
    %968 = vmatpush1.msra.mxu0 0.0
    %969 = vmatprep.subr.mxu0 0.0
    %970 = vmatpush1.msra.mxu0 0.0
    %971 = vmatprep.subr.mxu0 0.0
    %972 = vmatpush1.msra.mxu0 0.0
    %973 = vmatprep.subr.mxu0 0.0
    %974 = vmatpush1.msra.mxu0 0.0
    %975 = vmatprep.subr.mxu0 0.0
    %976 = vmatpush1.msra.mxu0 0.0
    %977 = vmatprep.subr.mxu0 0.0
    %978 = vmatpush1.msra.mxu0 0.0
    %979 = vmatprep.subr.mxu0 0.0
    %980 = vmatpush1.msra.mxu0 0.0
    %981 = vmatprep.subr.mxu0 0.0
    %982 = vmatpush1.msra.mxu0 0.0
    %983 = vmatprep.subr.mxu0 0.0
    %984 = vmatpush1.msra.mxu0 0.0
    %985 = vmatprep.subr.mxu0 0.0
    %986 = vmatpush1.msra.mxu0 0.0
    %987 = vmatprep.subr.mxu0 0.0
    %988 = vmatpush1.msra.mxu0 0.0
    %989 = vmatprep.subr.mxu0 0.0
    %990 = vmatpush1.msra.mxu0 0.0
    %991 = vmatprep.subr.mxu0 0.0
    %992 = vmatpush1.msra.mxu0 0.0
    %993 = vmatprep.mubr.f32.mxu0 0.0
    %994 = vmatmul.mubr.f32.gmra.mrb[0].mxu0 %v924
    %v995 = vpop.f32.mrb[0].mxu0
    %v996 = vadd.f32 0.0, %v995
    %v997 = vpop.f32.mrb[0].mxu0
    %998 = vmatprep.mubr.f32.mxu0 0.0
    %999 = vmatmul.mubr.f32.gmra.mrb[0].mxu0 %v927
    %v1000 = vpop.f32.mrb[0].mxu0
    %v1001 = vadd.f32 0.0, %v1000
    %v1002 = vpop.f32.mrb[0].mxu0
    %1003 = vdwg.mxu0
    %v1004 = vadd.f32 %v921, %v996
    %v1005 = vadd.f32 %v922, %v1001
    %v1006 = vlaneseq
    %v1007 = vshrl.u32 %v1006, 7
    %v1008 = vsub.s32 0, %v1007
    %v1009 = vrot.slane %v230, %v1008
    %v1010 = vadd.f32 %v1004, %v1009
    %v1011 = vadd.f32 %v1005, %v1009
    %s1012 = scalar_lea.vmem %s10, 64
    %v1013 = vld [vmem:[%s1012] sm:$0xff]
    %v1014 = vld [vmem:[%s1012 + $0x8] sm:$0xff]
    %v1015 = vld [vmem:[%s1012 + $0x10] sm:$0xff]
    %v1016 = vld [vmem:[%s1012 + $0x18] sm:$0xff]
    %s1017 = scalar_lea.vmem %s10, 96
    %v1018 = vld [vmem:[%s1017] sm:$0xff]
    %v1019 = vld [vmem:[%s1017 + $0x8] sm:$0xff]
    %v1020 = vld [vmem:[%s1017 + $0x10] sm:$0xff]
    %v1021 = vld [vmem:[%s1017 + $0x18] sm:$0xff]
    %1022 = vmatprep.subr.mxu0 0.0
    %1023 = vmatpush1.msra.mxu0 %v1013
    %1024 = vmatprep.subr.mxu0 0.0
    %1025 = vmatpush1.msra.mxu0 %v1014
    %1026 = vmatprep.subr.mxu0 0.0
    %1027 = vmatpush1.msra.mxu0 %v1015
    %1028 = vmatprep.subr.mxu0 0.0
    %1029 = vmatpush1.msra.mxu0 %v1016
    %1030 = vmatprep.subr.mxu0 0.0
    %1031 = vmatpush1.msra.mxu0 0.0
    %1032 = vmatprep.subr.mxu0 0.0
    %1033 = vmatpush1.msra.mxu0 0.0
    %1034 = vmatprep.subr.mxu0 0.0
    %1035 = vmatpush1.msra.mxu0 0.0
    %1036 = vmatprep.subr.mxu0 0.0
    %1037 = vmatpush1.msra.mxu0 0.0
    %1038 = vmatprep.subr.mxu0 0.0
    %1039 = vmatpush1.msra.mxu0 0.0
    %1040 = vmatprep.subr.mxu0 0.0
    %1041 = vmatpush1.msra.mxu0 0.0
    %1042 = vmatprep.subr.mxu0 0.0
    %1043 = vmatpush1.msra.mxu0 0.0
    %1044 = vmatprep.subr.mxu0 0.0
    %1045 = vmatpush1.msra.mxu0 0.0
    %1046 = vmatprep.subr.mxu0 0.0
    %1047 = vmatpush1.msra.mxu0 0.0
    %1048 = vmatprep.subr.mxu0 0.0
    %1049 = vmatpush1.msra.mxu0 0.0
    %1050 = vmatprep.subr.mxu0 0.0
    %1051 = vmatpush1.msra.mxu0 0.0
    %1052 = vmatprep.subr.mxu0 0.0
    %1053 = vmatpush1.msra.mxu0 0.0
    %1054 = vmatprep.subr.mxu0 0.0
    %1055 = vmatpush1.msra.mxu0 0.0
    %1056 = vmatprep.subr.mxu0 0.0
    %1057 = vmatpush1.msra.mxu0 0.0
    %1058 = vmatprep.subr.mxu0 0.0
    %1059 = vmatpush1.msra.mxu0 0.0
    %1060 = vmatprep.subr.mxu0 0.0
    %1061 = vmatpush1.msra.mxu0 0.0
    %1062 = vmatprep.subr.mxu0 0.0
    %1063 = vmatpush1.msra.mxu0 0.0
    %1064 = vmatprep.subr.mxu0 0.0
    %1065 = vmatpush1.msra.mxu0 0.0
    %1066 = vmatprep.subr.mxu0 0.0
    %1067 = vmatpush1.msra.mxu0 0.0
    %1068 = vmatprep.subr.mxu0 0.0
    %1069 = vmatpush1.msra.mxu0 0.0
    %1070 = vmatprep.subr.mxu0 0.0
    %1071 = vmatpush1.msra.mxu0 0.0
    %1072 = vmatprep.subr.mxu0 0.0
    %1073 = vmatpush1.msra.mxu0 0.0
    %1074 = vmatprep.subr.mxu0 0.0
    %1075 = vmatpush1.msra.mxu0 0.0
    %1076 = vmatprep.subr.mxu0 0.0
    %1077 = vmatpush1.msra.mxu0 0.0
    %1078 = vmatprep.subr.mxu0 0.0
    %1079 = vmatpush1.msra.mxu0 0.0
    %1080 = vmatprep.subr.mxu0 0.0
    %1081 = vmatpush1.msra.mxu0 0.0
    %1082 = vmatprep.subr.mxu0 0.0
    %1083 = vmatpush1.msra.mxu0 0.0
    %1084 = vmatprep.subr.mxu0 0.0
    %1085 = vmatpush1.msra.mxu0 0.0
    %1086 = vmatprep.mubr.f32.mxu0 0.0
    %1087 = vmatmul.mubr.f32.gmra.mrb[0].mxu0 %v924
    %v1088 = vpop.f32.mrb[0].mxu0
    %v1089 = vadd.f32 0.0, %v1088
    %v1090 = vpop.f32.mrb[0].mxu0
    %1091 = vmatprep.mubr.f32.mxu0 0.0
    %1092 = vmatmul.mubr.f32.gmra.mrb[0].mxu0 %v927
    %v1093 = vpop.f32.mrb[0].mxu0
    %v1094 = vadd.f32 0.0, %v1093
    %v1095 = vpop.f32.mrb[0].mxu0
    %1096 = vdwg.mxu0
    %1097 = vmatprep.subr.mxu0 0.0
    %1098 = vmatpush1.msra.mxu0 %v1089
    %1099 = vmatprep.subr.mxu0 0.0
    %1100 = vmatpush1.msra.mxu0 %v1094
    %1101 = vmatprep.subr.mxu0 0.0
    %1102 = vmatpush1.msra.mxu0 0.0
    %1103 = vmatprep.subr.mxu0 0.0
    %1104 = vmatpush1.msra.mxu0 0.0
    %1105 = vmatprep.subr.mxu0 0.0
    %1106 = vmatpush1.msra.mxu0 0.0
    %1107 = vmatprep.subr.mxu0 0.0
    %1108 = vmatpush1.msra.mxu0 0.0
    %1109 = vmatprep.subr.mxu0 0.0
    %1110 = vmatpush1.msra.mxu0 0.0
    %1111 = vmatprep.subr.mxu0 0.0
    %1112 = vmatpush1.msra.mxu0 0.0
    %1113 = vmatprep.subr.mxu0 0.0
    %1114 = vmatpush1.msra.mxu0 0.0
    %1115 = vmatprep.subr.mxu0 0.0
    %1116 = vmatpush1.msra.mxu0 0.0
    %1117 = vmatprep.subr.mxu0 0.0
    %1118 = vmatpush1.msra.mxu0 0.0
    %1119 = vmatprep.subr.mxu0 0.0
    %1120 = vmatpush1.msra.mxu0 0.0
    %1121 = vmatprep.subr.mxu0 0.0
    %1122 = vmatpush1.msra.mxu0 0.0
    %1123 = vmatprep.subr.mxu0 0.0
    %1124 = vmatpush1.msra.mxu0 0.0
    %1125 = vmatprep.subr.mxu0 0.0
    %1126 = vmatpush1.msra.mxu0 0.0
    %1127 = vmatprep.subr.mxu0 0.0
    %1128 = vmatpush1.msra.mxu0 0.0
    %1129 = vmatprep.subr.mxu0 0.0
    %1130 = vmatpush1.msra.mxu0 0.0
    %1131 = vmatprep.subr.mxu0 0.0
    %1132 = vmatpush1.msra.mxu0 0.0
    %1133 = vmatprep.subr.mxu0 0.0
    %1134 = vmatpush1.msra.mxu0 0.0
    %1135 = vmatprep.subr.mxu0 0.0
    %1136 = vmatpush1.msra.mxu0 0.0
    %1137 = vmatprep.subr.mxu0 0.0
    %1138 = vmatpush1.msra.mxu0 0.0
    %1139 = vmatprep.subr.mxu0 0.0
    %1140 = vmatpush1.msra.mxu0 0.0
    %1141 = vmatprep.subr.mxu0 0.0
    %1142 = vmatpush1.msra.mxu0 0.0
    %1143 = vmatprep.subr.mxu0 0.0
    %1144 = vmatpush1.msra.mxu0 0.0
    %1145 = vmatprep.subr.mxu0 0.0
    %1146 = vmatpush1.msra.mxu0 0.0
    %1147 = vmatprep.subr.mxu0 0.0
    %1148 = vmatpush1.msra.mxu0 0.0
    %1149 = vmatprep.subr.mxu0 0.0
    %1150 = vmatpush1.msra.mxu0 0.0
    %1151 = vmatprep.subr.mxu0 0.0
    %1152 = vmatpush1.msra.mxu0 0.0
    %1153 = vmatprep.subr.mxu0 0.0
    %1154 = vmatpush1.msra.mxu0 0.0
    %1155 = vmatprep.subr.mxu0 0.0
    %1156 = vmatpush1.msra.mxu0 0.0
    %1157 = vmatprep.subr.mxu0 0.0
    %1158 = vmatpush1.msra.mxu0 0.0
    %1159 = vmatprep.subr.mxu0 0.0
    %1160 = vmatpush1.msra.mxu0 0.0
    %1161 = vmatprep.mubr.f32.mxu0 0.0
    %1162 = vmatmul.mubr.f32.gmra.mrb[0].mxu0 %v499
    %v1163 = vpop.f32.mrb[0].mxu0
    %v1164 = vadd.f32 0.0, %v1163
    %v1165 = vpop.f32.mrb[0].mxu0
    %1166 = vmatprep.mubr.f32.mxu0 0.0
    %1167 = vmatmul.mubr.f32.gmra.mrb[0].mxu0 %v502
    %v1168 = vpop.f32.mrb[0].mxu0
    %v1169 = vadd.f32 0.0, %v1168
    %v1170 = vpop.f32.mrb[0].mxu0
    %1171 = vdwg.mxu0
    %v1172 = vmul.f32 %v226, %v1164
    %v1173 = vmul.f32 %v228, %v1169
    %1174 = vmatprep.subr.mxu0 0.0
    %1175 = vmatpush1.msra.mxu0 %v1018
    %1176 = vmatprep.subr.mxu0 0.0
    %1177 = vmatpush1.msra.mxu0 %v1019
    %1178 = vmatprep.subr.mxu0 0.0
    %1179 = vmatpush1.msra.mxu0 %v1020
    %1180 = vmatprep.subr.mxu0 0.0
    %1181 = vmatpush1.msra.mxu0 %v1021
    %1182 = vmatprep.subr.mxu0 0.0
    %1183 = vmatpush1.msra.mxu0 0.0
    %1184 = vmatprep.subr.mxu0 0.0
    %1185 = vmatpush1.msra.mxu0 0.0
    %1186 = vmatprep.subr.mxu0 0.0
    %1187 = vmatpush1.msra.mxu0 0.0
    %1188 = vmatprep.subr.mxu0 0.0
    %1189 = vmatpush1.msra.mxu0 0.0
    %1190 = vmatprep.subr.mxu0 0.0
    %1191 = vmatpush1.msra.mxu0 0.0
    %1192 = vmatprep.subr.mxu0 0.0
    %1193 = vmatpush1.msra.mxu0 0.0
    %1194 = vmatprep.subr.mxu0 0.0
    %1195 = vmatpush1.msra.mxu0 0.0
    %1196 = vmatprep.subr.mxu0 0.0
    %1197 = vmatpush1.msra.mxu0 0.0
    %1198 = vmatprep.subr.mxu0 0.0
    %1199 = vmatpush1.msra.mxu0 0.0
    %1200 = vmatprep.subr.mxu0 0.0
    %1201 = vmatpush1.msra.mxu0 0.0
    %1202 = vmatprep.subr.mxu0 0.0
    %1203 = vmatpush1.msra.mxu0 0.0
    %1204 = vmatprep.subr.mxu0 0.0
    %1205 = vmatpush1.msra.mxu0 0.0
    %1206 = vmatprep.subr.mxu0 0.0
    %1207 = vmatpush1.msra.mxu0 0.0
    %1208 = vmatprep.subr.mxu0 0.0
    %1209 = vmatpush1.msra.mxu0 0.0
    %1210 = vmatprep.subr.mxu0 0.0
    %1211 = vmatpush1.msra.mxu0 0.0
    %1212 = vmatprep.subr.mxu0 0.0
    %1213 = vmatpush1.msra.mxu0 0.0
    %1214 = vmatprep.subr.mxu0 0.0
    %1215 = vmatpush1.msra.mxu0 0.0
    %1216 = vmatprep.subr.mxu0 0.0
    %1217 = vmatpush1.msra.mxu0 0.0
    %1218 = vmatprep.subr.mxu0 0.0
    %1219 = vmatpush1.msra.mxu0 0.0
    %1220 = vmatprep.subr.mxu0 0.0
    %1221 = vmatpush1.msra.mxu0 0.0
    %1222 = vmatprep.subr.mxu0 0.0
    %1223 = vmatpush1.msra.mxu0 0.0
    %1224 = vmatprep.subr.mxu0 0.0
    %1225 = vmatpush1.msra.mxu0 0.0
    %1226 = vmatprep.subr.mxu0 0.0
    %1227 = vmatpush1.msra.mxu0 0.0
    %1228 = vmatprep.subr.mxu0 0.0
    %1229 = vmatpush1.msra.mxu0 0.0
    %1230 = vmatprep.subr.mxu0 0.0
    %1231 = vmatpush1.msra.mxu0 0.0
    %1232 = vmatprep.subr.mxu0 0.0
    %1233 = vmatpush1.msra.mxu0 0.0
    %1234 = vmatprep.subr.mxu0 0.0
    %1235 = vmatpush1.msra.mxu0 0.0
    %1236 = vmatprep.subr.mxu0 0.0
    %1237 = vmatpush1.msra.mxu0 0.0
    %1238 = vmatprep.mubr.f32.mxu0 0.0
    %1239 = vmatmul.mubr.f32.gmra.mrb[0].mxu0 %v766
    %v1240 = vpop.f32.mrb[0].mxu0
    %v1241 = vadd.f32 0.0, %v1240
    %v1242 = vpop.f32.mrb[0].mxu0
    %1243 = vmatprep.mubr.f32.mxu0 0.0
    %1244 = vmatmul.mubr.f32.gmra.mrb[0].mxu0 %v769
    %v1245 = vpop.f32.mrb[0].mxu0
    %v1246 = vadd.f32 0.0, %v1245
    %v1247 = vpop.f32.mrb[0].mxu0
    %1248 = vdwg.mxu0
    %v1249 = vadd.f32 %v1172, %v1241
    %v1250 = vadd.f32 %v1173, %v1246
    %v1251 = vlaneseq
    %v1252 = vshrl.u32 %v1251, 7
    %v1253 = vsub.s32 1, %v1252
    %v1254 = vrot.slane %v230, %v1253
    %v1255 = vadd.f32 %v1249, %v1254
    %v1256 = vadd.f32 %v1250, %v1254
    %1257 = vst.msk [vmem:[#allocation2] sm:$0xff] %vm135, %v1255
    %1258 = vst.msk [vmem:[#allocation2 + $0x8] sm:$0xff] %vm135, %v1256
    %1259 = vst.msk [vmem:[#allocation4] sm:$0xff] %vm135, %v1010
    %1260 = vst.msk [vmem:[#allocation4 + $0x8] sm:$0xff] %vm135, %v1011
    %v1261 = vld [vmem:[%s3] sm:$0xff]
    %v1262 = vlaneseq
    %v1263 = vand.u32 %v1262, 127
    %1264 = vset.pattern.permute.xlu0 0
    %1265 = vperm.xlu0 %1264, %v1261
    %v1266 = vpop.permute.xlu0 %1265
    %vm1267 = vcmp.eq.s32.totalorder %v1266, %v1263
    %v1268 = vsel %vm1267, 1, 0
    %v1269 = vcvt.s32.f32 %v1268
    %v1270 = vld [vmem:[%s4] sm:$0xff]
    %1271 = vset.pattern.permute.xlu0 0
    %1272 = vperm.xlu0 %1271, %v1270
    %v1273 = vpop.permute.xlu0 %1272
    %vm1274 = vcmp.eq.s32.totalorder %v1273, %v1263
    %v1275 = vsel %vm1274, 1, 0
    %v1276 = vcvt.s32.f32 %v1275
    %v1278 = vsel %vm135, %v1269, 0
    %1280 = vmatprep.subr.mxu0 0.0
    %1281 = vmatpush1.msra.mxu0 %v1255
    %1282 = vmatprep.subr.mxu0 0.0
    %1283 = vmatpush1.msra.mxu0 %v1256
    %1284 = vmatprep.subr.mxu0 0.0
    %1285 = vmatpush1.msra.mxu0 0.0
    %1286 = vmatprep.subr.mxu0 0.0
    %1287 = vmatpush1.msra.mxu0 0.0
    %1288 = vmatprep.subr.mxu0 0.0
    %1289 = vmatpush1.msra.mxu0 0.0
    %1290 = vmatprep.subr.mxu0 0.0
    %1291 = vmatpush1.msra.mxu0 0.0
    %1292 = vmatprep.subr.mxu0 0.0
    %1293 = vmatpush1.msra.mxu0 0.0
    %1294 = vmatprep.subr.mxu0 0.0
    %1295 = vmatpush1.msra.mxu0 0.0
    %1296 = vmatprep.subr.mxu0 0.0
    %1297 = vmatpush1.msra.mxu0 0.0
    %1298 = vmatprep.subr.mxu0 0.0
    %1299 = vmatpush1.msra.mxu0 0.0
    %1300 = vmatprep.subr.mxu0 0.0
    %1301 = vmatpush1.msra.mxu0 0.0
    %1302 = vmatprep.subr.mxu0 0.0
    %1303 = vmatpush1.msra.mxu0 0.0
    %1304 = vmatprep.subr.mxu0 0.0
    %1305 = vmatpush1.msra.mxu0 0.0
    %1306 = vmatprep.subr.mxu0 0.0
    %1307 = vmatpush1.msra.mxu0 0.0
    %1308 = vmatprep.subr.mxu0 0.0
    %1309 = vmatpush1.msra.mxu0 0.0
    %1310 = vmatprep.subr.mxu0 0.0
    %1311 = vmatpush1.msra.mxu0 0.0
    %1312 = vmatprep.subr.mxu0 0.0
    %1313 = vmatpush1.msra.mxu0 0.0
    %1314 = vmatprep.subr.mxu0 0.0
    %1315 = vmatpush1.msra.mxu0 0.0
    %1316 = vmatprep.subr.mxu0 0.0
    %1317 = vmatpush1.msra.mxu0 0.0
    %1318 = vmatprep.subr.mxu0 0.0
    %1319 = vmatpush1.msra.mxu0 0.0
    %1320 = vmatprep.subr.mxu0 0.0
    %1321 = vmatpush1.msra.mxu0 0.0
    %1322 = vmatprep.subr.mxu0 0.0
    %1323 = vmatpush1.msra.mxu0 0.0
    %1324 = vmatprep.subr.mxu0 0.0
    %1325 = vmatpush1.msra.mxu0 0.0
    %1326 = vmatprep.subr.mxu0 0.0
    %1327 = vmatpush1.msra.mxu0 0.0
    %1328 = vmatprep.subr.mxu0 0.0
    %1329 = vmatpush1.msra.mxu0 0.0
    %1330 = vmatprep.subr.mxu0 0.0
    %1331 = vmatpush1.msra.mxu0 0.0
    %1332 = vmatprep.subr.mxu0 0.0
    %1333 = vmatpush1.msra.mxu0 0.0
    %1334 = vmatprep.subr.mxu0 0.0
    %1335 = vmatpush1.msra.mxu0 0.0
    %1336 = vmatprep.subr.mxu0 0.0
    %1337 = vmatpush1.msra.mxu0 0.0
    %1338 = vmatprep.subr.mxu0 0.0
    %1339 = vmatpush1.msra.mxu0 0.0
    %1340 = vmatprep.subr.mxu0 0.0
    %1341 = vmatpush1.msra.mxu0 0.0
    %1342 = vmatprep.subr.mxu0 0.0
    %1343 = vmatpush1.msra.mxu0 0.0
    %1344 = vmatprep.mubr.f32.mxu0 0.0
    %1345 = vmatmul.mubr.f32.gmra.mrb[0].mxu0 %v1278
    %v1346 = vpop.f32.mrb[0].mxu0
    %v1347 = vadd.f32 0.0, %v1346
    %v1348 = vpop.f32.mrb[0].mxu0
    %1349 = vdwg.mxu0
    %v1351 = vsel %vm135, %v1276, 0
    %1353 = vmatprep.subr.mxu0 0.0
    %1354 = vmatpush1.msra.mxu0 %v1010
    %1355 = vmatprep.subr.mxu0 0.0
    %1356 = vmatpush1.msra.mxu0 %v1011
    %1357 = vmatprep.subr.mxu0 0.0
    %1358 = vmatpush1.msra.mxu0 0.0
    %1359 = vmatprep.subr.mxu0 0.0
    %1360 = vmatpush1.msra.mxu0 0.0
    %1361 = vmatprep.subr.mxu0 0.0
    %1362 = vmatpush1.msra.mxu0 0.0
    %1363 = vmatprep.subr.mxu0 0.0
    %1364 = vmatpush1.msra.mxu0 0.0
    %1365 = vmatprep.subr.mxu0 0.0
    %1366 = vmatpush1.msra.mxu0 0.0
    %1367 = vmatprep.subr.mxu0 0.0
    %1368 = vmatpush1.msra.mxu0 0.0
    %1369 = vmatprep.subr.mxu0 0.0
    %1370 = vmatpush1.msra.mxu0 0.0
    %1371 = vmatprep.subr.mxu0 0.0
    %1372 = vmatpush1.msra.mxu0 0.0
    %1373 = vmatprep.subr.mxu0 0.0
    %1374 = vmatpush1.msra.mxu0 0.0
    %1375 = vmatprep.subr.mxu0 0.0
    %1376 = vmatpush1.msra.mxu0 0.0
    %1377 = vmatprep.subr.mxu0 0.0
    %1378 = vmatpush1.msra.mxu0 0.0
    %1379 = vmatprep.subr.mxu0 0.0
    %1380 = vmatpush1.msra.mxu0 0.0
    %1381 = vmatprep.subr.mxu0 0.0
    %1382 = vmatpush1.msra.mxu0 0.0
    %1383 = vmatprep.subr.mxu0 0.0
    %1384 = vmatpush1.msra.mxu0 0.0
    %1385 = vmatprep.subr.mxu0 0.0
    %1386 = vmatpush1.msra.mxu0 0.0
    %1387 = vmatprep.subr.mxu0 0.0
    %1388 = vmatpush1.msra.mxu0 0.0
    %1389 = vmatprep.subr.mxu0 0.0
    %1390 = vmatpush1.msra.mxu0 0.0
    %1391 = vmatprep.subr.mxu0 0.0
    %1392 = vmatpush1.msra.mxu0 0.0
    %1393 = vmatprep.subr.mxu0 0.0
    %1394 = vmatpush1.msra.mxu0 0.0
    %1395 = vmatprep.subr.mxu0 0.0
    %1396 = vmatpush1.msra.mxu0 0.0
    %1397 = vmatprep.subr.mxu0 0.0
    %1398 = vmatpush1.msra.mxu0 0.0
    %1399 = vmatprep.subr.mxu0 0.0
    %1400 = vmatpush1.msra.mxu0 0.0
    %1401 = vmatprep.subr.mxu0 0.0
    %1402 = vmatpush1.msra.mxu0 0.0
    %1403 = vmatprep.subr.mxu0 0.0
    %1404 = vmatpush1.msra.mxu0 0.0
    %1405 = vmatprep.subr.mxu0 0.0
    %1406 = vmatpush1.msra.mxu0 0.0
    %1407 = vmatprep.subr.mxu0 0.0
    %1408 = vmatpush1.msra.mxu0 0.0
    %1409 = vmatprep.subr.mxu0 0.0
    %1410 = vmatpush1.msra.mxu0 0.0
    %1411 = vmatprep.subr.mxu0 0.0
    %1412 = vmatpush1.msra.mxu0 0.0
    %1413 = vmatprep.subr.mxu0 0.0
    %1414 = vmatpush1.msra.mxu0 0.0
    %1415 = vmatprep.subr.mxu0 0.0
    %1416 = vmatpush1.msra.mxu0 0.0
    %1417 = vmatprep.mubr.f32.mxu0 0.0
    %1418 = vmatmul.mubr.f32.gmra.mrb[0].mxu0 %v1351
    %v1419 = vpop.f32.mrb[0].mxu0
    %v1420 = vadd.f32 0.0, %v1419
    %v1421 = vpop.f32.mrb[0].mxu0
    %1422 = vdwg.mxu0
    %1424 = vrot.lane.b32.xlu0 %v1420, 16
    %v1425 = vpop.permute.xlu0 %1424
    %v1427 = vsel %vm135, %v1347, %v1425
    %1428 = vst.msk [vmem:[#allocation6] sm:$0xff] %vm87, %v1427
    %v1429 = vld [vmem:[%s12] sm:$0xff]
    %v1430 = vld [vmem:[%s12 + $0x8] sm:$0xff]
    %s1431 = scalar_lea.vmem %s12, 16
    %v1432 = vld [vmem:[%s1431] sm:$0xff]
    %v1433 = vld [vmem:[%s1431 + $0x8] sm:$0xff]
    %v1434 = vsel %vm135, %v1420, 0
    %1436 = vmatprep.subr.mxu0 0.0
    %1437 = vmatpush1.msra.mxu0 %v1432
    %1438 = vmatprep.subr.mxu0 0.0
    %1439 = vmatpush1.msra.mxu0 %v1433
    %1440 = vmatprep.subr.mxu0 0.0
    %1441 = vmatpush1.msra.mxu0 0.0
    %1442 = vmatprep.subr.mxu0 0.0
    %1443 = vmatpush1.msra.mxu0 0.0
    %1444 = vmatprep.subr.mxu0 0.0
    %1445 = vmatpush1.msra.mxu0 0.0
    %1446 = vmatprep.subr.mxu0 0.0
    %1447 = vmatpush1.msra.mxu0 0.0
    %1448 = vmatprep.subr.mxu0 0.0
    %1449 = vmatpush1.msra.mxu0 0.0
    %1450 = vmatprep.subr.mxu0 0.0
    %1451 = vmatpush1.msra.mxu0 0.0
    %1452 = vmatprep.subr.mxu0 0.0
    %1453 = vmatpush1.msra.mxu0 0.0
    %1454 = vmatprep.subr.mxu0 0.0
    %1455 = vmatpush1.msra.mxu0 0.0
    %1456 = vmatprep.subr.mxu0 0.0
    %1457 = vmatpush1.msra.mxu0 0.0
    %1458 = vmatprep.subr.mxu0 0.0
    %1459 = vmatpush1.msra.mxu0 0.0
    %1460 = vmatprep.subr.mxu0 0.0
    %1461 = vmatpush1.msra.mxu0 0.0
    %1462 = vmatprep.subr.mxu0 0.0
    %1463 = vmatpush1.msra.mxu0 0.0
    %1464 = vmatprep.subr.mxu0 0.0
    %1465 = vmatpush1.msra.mxu0 0.0
    %1466 = vmatprep.subr.mxu0 0.0
    %1467 = vmatpush1.msra.mxu0 0.0
    %1468 = vmatprep.subr.mxu0 0.0
    %1469 = vmatpush1.msra.mxu0 0.0
    %1470 = vmatprep.subr.mxu0 0.0
    %1471 = vmatpush1.msra.mxu0 0.0
    %1472 = vmatprep.subr.mxu0 0.0
    %1473 = vmatpush1.msra.mxu0 0.0
    %1474 = vmatprep.subr.mxu0 0.0
    %1475 = vmatpush1.msra.mxu0 0.0
    %1476 = vmatprep.subr.mxu0 0.0
    %1477 = vmatpush1.msra.mxu0 0.0
    %1478 = vmatprep.subr.mxu0 0.0
    %1479 = vmatpush1.msra.mxu0 0.0
    %1480 = vmatprep.subr.mxu0 0.0
    %1481 = vmatpush1.msra.mxu0 0.0
    %1482 = vmatprep.subr.mxu0 0.0
    %1483 = vmatpush1.msra.mxu0 0.0
    %1484 = vmatprep.subr.mxu0 0.0
    %1485 = vmatpush1.msra.mxu0 0.0
    %1486 = vmatprep.subr.mxu0 0.0
    %1487 = vmatpush1.msra.mxu0 0.0
    %1488 = vmatprep.subr.mxu0 0.0
    %1489 = vmatpush1.msra.mxu0 0.0
    %1490 = vmatprep.subr.mxu0 0.0
    %1491 = vmatpush1.msra.mxu0 0.0
    %1492 = vmatprep.subr.mxu0 0.0
    %1493 = vmatpush1.msra.mxu0 0.0
    %1494 = vmatprep.subr.mxu0 0.0
    %1495 = vmatpush1.msra.mxu0 0.0
    %1496 = vmatprep.subr.mxu0 0.0
    %1497 = vmatpush1.msra.mxu0 0.0
    %1498 = vmatprep.subr.mxu0 0.0
    %1499 = vmatpush1.msra.mxu0 0.0
    %1500 = vmatprep.mubr.f32.mxu0 0.0
    %1501 = vmatmul.mubr.f32.gmra.mrb[0].mxu0 %v1434
    %v1502 = vpop.f32.mrb[0].mxu0
    %v1503 = vadd.f32 0.0, %v1502
    %v1504 = vpop.f32.mrb[0].mxu0
    %1505 = vdwg.mxu0
    %v1507 = vsel %vm135, %v1347, 0
    %1509 = vmatprep.subr.mxu0 0.0
    %1510 = vmatpush1.msra.mxu0 %v1429
    %1511 = vmatprep.subr.mxu0 0.0
    %1512 = vmatpush1.msra.mxu0 %v1430
    %1513 = vmatprep.subr.mxu0 0.0
    %1514 = vmatpush1.msra.mxu0 0.0
    %1515 = vmatprep.subr.mxu0 0.0
    %1516 = vmatpush1.msra.mxu0 0.0
    %1517 = vmatprep.subr.mxu0 0.0
    %1518 = vmatpush1.msra.mxu0 0.0
    %1519 = vmatprep.subr.mxu0 0.0
    %1520 = vmatpush1.msra.mxu0 0.0
    %1521 = vmatprep.subr.mxu0 0.0
    %1522 = vmatpush1.msra.mxu0 0.0
    %1523 = vmatprep.subr.mxu0 0.0
    %1524 = vmatpush1.msra.mxu0 0.0
    %1525 = vmatprep.subr.mxu0 0.0
    %1526 = vmatpush1.msra.mxu0 0.0
    %1527 = vmatprep.subr.mxu0 0.0
    %1528 = vmatpush1.msra.mxu0 0.0
    %1529 = vmatprep.subr.mxu0 0.0
    %1530 = vmatpush1.msra.mxu0 0.0
    %1531 = vmatprep.subr.mxu0 0.0
    %1532 = vmatpush1.msra.mxu0 0.0
    %1533 = vmatprep.subr.mxu0 0.0
    %1534 = vmatpush1.msra.mxu0 0.0
    %1535 = vmatprep.subr.mxu0 0.0
    %1536 = vmatpush1.msra.mxu0 0.0
    %1537 = vmatprep.subr.mxu0 0.0
    %1538 = vmatpush1.msra.mxu0 0.0
    %1539 = vmatprep.subr.mxu0 0.0
    %1540 = vmatpush1.msra.mxu0 0.0
    %1541 = vmatprep.subr.mxu0 0.0
    %1542 = vmatpush1.msra.mxu0 0.0
    %1543 = vmatprep.subr.mxu0 0.0
    %1544 = vmatpush1.msra.mxu0 0.0
    %1545 = vmatprep.subr.mxu0 0.0
    %1546 = vmatpush1.msra.mxu0 0.0
    %1547 = vmatprep.subr.mxu0 0.0
    %1548 = vmatpush1.msra.mxu0 0.0
    %1549 = vmatprep.subr.mxu0 0.0
    %1550 = vmatpush1.msra.mxu0 0.0
    %1551 = vmatprep.subr.mxu0 0.0
    %1552 = vmatpush1.msra.mxu0 0.0
    %1553 = vmatprep.subr.mxu0 0.0
    %1554 = vmatpush1.msra.mxu0 0.0
    %1555 = vmatprep.subr.mxu0 0.0
    %1556 = vmatpush1.msra.mxu0 0.0
    %1557 = vmatprep.subr.mxu0 0.0
    %1558 = vmatpush1.msra.mxu0 0.0
    %1559 = vmatprep.subr.mxu0 0.0
    %1560 = vmatpush1.msra.mxu0 0.0
    %1561 = vmatprep.subr.mxu0 0.0
    %1562 = vmatpush1.msra.mxu0 0.0
    %1563 = vmatprep.subr.mxu0 0.0
    %1564 = vmatpush1.msra.mxu0 0.0
    %1565 = vmatprep.subr.mxu0 0.0
    %1566 = vmatpush1.msra.mxu0 0.0
    %1567 = vmatprep.subr.mxu0 0.0
    %1568 = vmatpush1.msra.mxu0 0.0
    %1569 = vmatprep.subr.mxu0 0.0
    %1570 = vmatpush1.msra.mxu0 0.0
    %1571 = vmatprep.subr.mxu0 0.0
    %1572 = vmatpush1.msra.mxu0 0.0
    %1573 = vmatprep.mubr.f32.mxu0 0.0
    %1574 = vmatmul.mubr.f32.gmra.mrb[0].mxu0 %v1507
    %v1575 = vpop.f32.mrb[0].mxu0
    %v1576 = vadd.f32 %v1503, %v1575
    %v1577 = vpop.f32.mrb[0].mxu0
    %1578 = vdwg.mxu0
    %v1579 = vlaneseq
    %v1580 = vshrl.u32 %v1579, 7
    %v1581 = vsub.s32 2, %v1580
    %v1582 = vrot.slane %v230, %v1581
    %v1583 = vadd.f32 %v1576, %v1582
    %v1584 = vmax.f32 %v1583, 0.0
    %v1585 = vld [vmem:[%s13] sm:$0xff]
    %v1586 = vld [vmem:[%s13 + $0x8] sm:$0xff]
    %v1587 = vld [vmem:[%s14] sm:$0x1]
    %v1589 = vlaneseq
    %v1590 = vshrl.u32 %v1589, 7
    %v1591 = vsub.s32 0, %v1590
    %v1592 = vrot.slane %v1587, %v1591
    %v1595 = vsel %vm135, %v1584, 0
    %1597 = vmatprep.subr.mxu0 0.0
    %1598 = vmatpush1.msra.mxu0 %v1585
    %1599 = vmatprep.subr.mxu0 0.0
    %1600 = vmatpush1.msra.mxu0 %v1586
    %1601 = vmatprep.subr.mxu0 0.0
    %1602 = vmatpush1.msra.mxu0 0.0
    %1603 = vmatprep.subr.mxu0 0.0
    %1604 = vmatpush1.msra.mxu0 0.0
    %1605 = vmatprep.subr.mxu0 0.0
    %1606 = vmatpush1.msra.mxu0 0.0
    %1607 = vmatprep.subr.mxu0 0.0
    %1608 = vmatpush1.msra.mxu0 0.0
    %1609 = vmatprep.subr.mxu0 0.0
    %1610 = vmatpush1.msra.mxu0 0.0
    %1611 = vmatprep.subr.mxu0 0.0
    %1612 = vmatpush1.msra.mxu0 0.0
    %1613 = vmatprep.subr.mxu0 0.0
    %1614 = vmatpush1.msra.mxu0 0.0
    %1615 = vmatprep.subr.mxu0 0.0
    %1616 = vmatpush1.msra.mxu0 0.0
    %1617 = vmatprep.subr.mxu0 0.0
    %1618 = vmatpush1.msra.mxu0 0.0
    %1619 = vmatprep.subr.mxu0 0.0
    %1620 = vmatpush1.msra.mxu0 0.0
    %1621 = vmatprep.subr.mxu0 0.0
    %1622 = vmatpush1.msra.mxu0 0.0
    %1623 = vmatprep.subr.mxu0 0.0
    %1624 = vmatpush1.msra.mxu0 0.0
    %1625 = vmatprep.subr.mxu0 0.0
    %1626 = vmatpush1.msra.mxu0 0.0
    %1627 = vmatprep.subr.mxu0 0.0
    %1628 = vmatpush1.msra.mxu0 0.0
    %1629 = vmatprep.subr.mxu0 0.0
    %1630 = vmatpush1.msra.mxu0 0.0
    %1631 = vmatprep.subr.mxu0 0.0
    %1632 = vmatpush1.msra.mxu0 0.0
    %1633 = vmatprep.subr.mxu0 0.0
    %1634 = vmatpush1.msra.mxu0 0.0
    %1635 = vmatprep.subr.mxu0 0.0
    %1636 = vmatpush1.msra.mxu0 0.0
    %1637 = vmatprep.subr.mxu0 0.0
    %1638 = vmatpush1.msra.mxu0 0.0
    %1639 = vmatprep.subr.mxu0 0.0
    %1640 = vmatpush1.msra.mxu0 0.0
    %1641 = vmatprep.subr.mxu0 0.0
    %1642 = vmatpush1.msra.mxu0 0.0
    %1643 = vmatprep.subr.mxu0 0.0
    %1644 = vmatpush1.msra.mxu0 0.0
    %1645 = vmatprep.subr.mxu0 0.0
    %1646 = vmatpush1.msra.mxu0 0.0
    %1647 = vmatprep.subr.mxu0 0.0
    %1648 = vmatpush1.msra.mxu0 0.0
    %1649 = vmatprep.subr.mxu0 0.0
    %1650 = vmatpush1.msra.mxu0 0.0
    %1651 = vmatprep.subr.mxu0 0.0
    %1652 = vmatpush1.msra.mxu0 0.0
    %1653 = vmatprep.subr.mxu0 0.0
    %1654 = vmatpush1.msra.mxu0 0.0
    %1655 = vmatprep.subr.mxu0 0.0
    %1656 = vmatpush1.msra.mxu0 0.0
    %1657 = vmatprep.subr.mxu0 0.0
    %1658 = vmatpush1.msra.mxu0 0.0
    %1659 = vmatprep.subr.mxu0 0.0
    %1660 = vmatpush1.msra.mxu0 0.0
    %1661 = vmatprep.mubr.f32.mxu0 0.0
    %1662 = vmatmul.mubr.f32.gmra.mrb[0].mxu0 %v1595
    %v1663 = vpop.f32.mrb[0].mxu0
    %v1664 = vadd.f32 %v1592, %v1663
    %v1665 = vpop.f32.mrb[0].mxu0
    %1666 = vdwg.mxu0
    %vm1667 = vcmask 15360
    %v1668 = vsel %vm1667, %v1664, -inf
    %1669 = vmax.xlane.f32.xlu0 %v1668
    %v1670 = vpop.xlane.xlu0 %1669
    %v1671 = vsub.f32 %v1664, %v1670
    %v1672 = vmul.f32 %v1671, 1.442695
    %v1673 = vpow.pop %v1672
    %v1674 = vsel %vm1667, %v1673, 0.0
    %1675 = vadd.xlane.f32.xlu0 %v1674
    %v1676 = vpop.xlane.xlu0 %1675
    %v1677 = vrcp.pop %v1676
    %v1678 = vmul.f32 %v1673, %v1677
    %1679 = vst.msk [vmem:[%s15] sm:$0xff] %vm1667, %v1678
    // Predicated region
    $region62: #{model_forward.1} parent=1 // pred_check
      _
    $region63: #{model_forward.1} parent=1 // pred_check_branch
      %1681 = sbr.rel (0) target = $region65
    $region64: #{model_forward.1} parent=1 // pred_region
      _
    $region65: #{model_forward.1} parent=1 // pred_fallthru
      _
    // Predicated region
    $region66: #{model_forward.1} parent=1 // pred_check
      _
    $region67: #{model_forward.1} parent=1 // pred_check_branch
      %1683 = sbr.rel (0) target = $region69
    $region68: #{model_forward.1} parent=1 // pred_region
      %s1685 = ssub.s32 256, 256
      %1686 = vsyncadd [#allocation3], %s1685
      %s1687 = sshll.u32 [#allocation2], 4
      %s1688 = int_to_ptr.vmem [resolvable:$true] %s1687
      %1693 = dma.vmem_to_hbm [thread:$0]  %s1688, 256, %s16, [#allocation3], 128, 128, 8
    $region69: #{model_forward.1} parent=1 // pred_fallthru
      _
    // Predicated region
    $region70: #{model_forward.1} parent=1 // pred_check
      _
    $region71: #{model_forward.1} parent=1 // pred_check_branch
      %1695 = sbr.rel (0) target = $region73
    $region72: #{model_forward.1} parent=1 // pred_region
      %s1697 = ssub.s32 256, 256
      %1698 = vsyncadd [#allocation5], %s1697
      %s1699 = sshll.u32 [#allocation4], 4
      %s1700 = int_to_ptr.vmem [resolvable:$true] %s1699
      %1705 = dma.vmem_to_hbm [thread:$0]  %s1700, 256, %s17, [#allocation5], 128, 128, 8
    $region73: #{model_forward.1} parent=1 // pred_fallthru
      _
    // Predicated region
    $region74: #{model_forward.1} parent=1 // pred_check
      _
    $region75: #{model_forward.1} parent=1 // pred_check_branch
      %1707 = sbr.rel (0) target = $region77
    $region76: #{model_forward.1} parent=1 // pred_region
      %s1709 = ssub.s32 128, 128
      %1710 = vsyncadd [#allocation5], %s1709
      %s1712 = sshll.u32 [#allocation6], 4
      %s1713 = int_to_ptr.vmem [resolvable:$true] %s1712
      %1715 = dma.vmem_to_hbm [thread:$0]  %s1713, 128, %s18, [#allocation5]
    $region77: #{model_forward.1} parent=1 // pred_fallthru
      _
    // Predicated region
    $region78: #{model_forward.1} parent=1 // pred_check
      _
    $region79: #{model_forward.1} parent=1 // pred_check_branch
      %1717 = sbr.rel (0) target = $region81
    $region80: #{model_forward.1} parent=1 // pred_region
      _
    $region81: #{model_forward.1} parent=1 // pred_fallthru
      _
    // Predicated region
    $region82: #{model_forward.1} parent=1 // pred_check
      _
    $region83: #{model_forward.1} parent=1 // pred_check_branch
      %1719 = sbr.rel (0) target = $region85
    $region84: #{model_forward.1} parent=1 // pred_region
      %1720 = dma.done [#allocation3], 256
    $region85: #{model_forward.1} parent=1 // pred_fallthru
      _
    // Predicated region
    $region86: #{model_forward.1} parent=1 // pred_check
      _
    $region87: #{model_forward.1} parent=1 // pred_check_branch
      %1722 = sbr.rel (0) target = $region89
    $region88: #{model_forward.1} parent=1 // pred_region
      %1723 = dma.done [#allocation5], 256
    $region89: #{model_forward.1} parent=1 // pred_fallthru
      _
    // Predicated region
    $region90: #{model_forward.1} parent=1 // pred_check
      _
    $region91: #{model_forward.1} parent=1 // pred_check_branch
      %1725 = sbr.rel (0) target = $region93
    $region92: #{model_forward.1} parent=1 // pred_region
      %1726 = dma.done [#allocation5], 128
    $region93: #{model_forward.1} parent=1 // pred_fallthru
      _
    %1727 = vsyncpa [#allocation3], 1
    %1728 = vsyncpa [#allocation5], 1

</llo_original>
